<compile_context>
chip_gen: v7x
topology: tpu7x:2x2x1
jax: 0.10.0
libtpu: 0.0.40
codegen_flags: <defaults>
</compile_context>

<pallas_src>
import jax
import jax.numpy as jnp
from jax.experimental import pallas as pl
from jax.experimental.pallas import tpu as pltpu


def _round_up(x, m):
    return ((x + m - 1) // m) * m


def _cdiv(a, b):
    return -(-a // b)


def _pad2(a, rows, cols):
    r, c = a.shape
    return jnp.pad(a, ((0, rows - r), (0, cols - c)))


def _chip_vmem_bytes():
    """Per-TensorCore VMEM capacity; conservative fallback if the query fails."""
    try:
        return int(pltpu.get_tpu_info().vmem_capacity_bytes)
    except Exception:
        return 64 << 20   # v7x per-core size; safe lower bound for v5e/v6e too


def mlp_kernel(x_ref,
               w1_ref, b1_ref, w2_ref, b2_ref, w3_ref, b3_ref,
               w4_ref, b4_ref, w5_ref, b5_ref, w6_ref, b6_ref,
               o_ref):
    """Fused 6-layer autoencoder for one (TB, Dp) batch tile.

    Weights are weight-stationary (constant index_map, single-buffered); the
    Detrender mean was folded into b1 / b6 by the wrapper, so the body is a
    pure chain of 6 MXU matmuls with an f32 bias/ReLU epilogue on the VPU.
    """
    def layer(h, w_ref, b_ref, relu):
        y = jnp.dot(h.astype(w_ref.dtype), w_ref[...],
                    preferred_element_type=jnp.float32) + b_ref[...]
        if relu:
            y = jnp.maximum(y, 0.0)
        return y

    h = layer(x_ref[...], w1_ref, b1_ref, True)     # encoder.linear1 + relu
    h = layer(h, w2_ref, b2_ref, True)              # encoder.linear2 + relu
    z = layer(h, w3_ref, b3_ref, True)              # encoder.linear3 + relu
    h = layer(z, w4_ref, b4_ref, True)              # decoder.linear1 + relu
    h = layer(h, w5_ref, b5_ref, True)              # decoder.linear2 + relu
    o_ref[...] = layer(h, w6_ref, b6_ref, False).astype(o_ref.dtype)


def make_mlp_params(seq_len, num_channels, latent_space_size, key):
    """nn.Linear-equivalent params, stored as (in, out) so y = x @ W + b."""
    D = seq_len * num_channels
    dims = [
        (D, D // 2),                   # encoder.linear1
        (D // 2, D // 4),              # encoder.linear2
        (D // 4, latent_space_size),   # encoder.linear3
        (latent_space_size, D // 4),   # decoder.linear1
        (D // 4, D // 2),              # decoder.linear2
        (D // 2, D),                   # decoder.linear3
    ]
    params = []
    for fan_in, fan_out in dims:
        kw, kb, key = jax.random.split(key, 3)
        bound = 1.0 / jnp.sqrt(fan_in)
        w = jax.random.uniform(kw, (fan_in, fan_out), jnp.float32, -bound, bound)
        b = jax.random.uniform(kb, (1, fan_out), jnp.float32, -bound, bound)
        params += [w, b]
    # Detrender mean parameter, like nn.Parameter(torch.zeros(1, 1, C))
    mean = jnp.zeros((1, 1, num_channels), jnp.float32)
    return params, mean


def mlp_forward(X, params, mean, use_normalizer=True,
                compute_dtype=None, out_dtype=None,
                max_batch_tile=None, force_pallas=False):
    B, L, C = X.shape
    D = L * C

    # Tiny-D gate: with everything padded to 128, >90% of the FLOPs are zeros
    # and the run is dominated by per-step overhead + the weight DMA prologue.
    if D < 256 and not force_pallas:
        return mlp_reference(X, params, mean, use_normalizer=use_normalizer)

    (w1, b1, w2, b2, w3, b3, w4, b4, w5, b5, w6, b6) = params
    vmem_cap = _chip_vmem_bytes()

    # ---- Fold Detrender mean into first/last biases (free in the wrapper) ----
    if use_normalizer:
        mean_row = jnp.tile(mean.reshape(1, C), (1, L)).reshape(1, D).astype(jnp.float32)
        b1 = b1 - mean_row @ w1
        b6 = b6 + mean_row

    ws = [w1, w2, w3, w4, w5, w6]
    bs = [b1, b2, b3, b4, b5, b6]
    pdims = [(_round_up(w.shape[0], 128), _round_up(w.shape[1], 128)) for w in ws]
    Dp = pdims[0][0]

    # ---- Chip-aware dtype policy ----
    # Prefer bf16 weights/activations when f32 resident weights would be tight
    # in this chip's VMEM (v7x: 64 MiB/TC).  Accumulation is always f32 and
    # the bias/ReLU epilogue stays f32 (v5e has no bf16 VPU path).
    w_elems = sum(ip * op for ip, op in pdims)
    if compute_dtype is None:
        compute_dtype = jnp.bfloat16 if (w_elems * 4 > 0.35 * vmem_cap) else jnp.float32
    if out_dtype is None:
        # bf16 output in bf16 mode halves HBM writeback / vst pressure.
        out_dtype = compute_dtype
    itm = jnp.dtype(compute_dtype).itemsize
    oitm = jnp.dtype(out_dtype).itemsize
    # TODO(synk): add an int8 weight path (per-output-channel scales folded
    # into the f32 bias epilogue) for v6e's i8 MXU; v7x would need fp8 instead.

    # ---- Batch tiling: >=2 grid steps so v7x's two TCs both get work ----
    if max_batch_tile is None:
        max_batch_tile = 512 if vmem_cap >= (100 << 20) else 256  # v6e vs v7x/v5e
    TB = max(8, min(max_batch_tile, _round_up(_cdiv(B, 2), 8)))
    Bp = _round_up(B, TB)
    grid = (Bp // TB,)

    # NOTE: in bf16 mode the *input* is also cast to bf16 (intentional — the
    # whole activation chain runs on the bf16 MXU path with f32 accumulation).
    x = X.reshape(B, D).astype(jnp.float32)
    x = jnp.pad(x, ((0, Bp - B), (0, Dp - D))).astype(compute_dtype)

    padded = []
    for w, b, (ip, op) in zip(ws, bs, pdims):
        padded.append(_pad2(w, ip, op).astype(compute_dtype))     # weights
        padded.append(_pad2(b.astype(jnp.float32), 1, op))        # biases stay f32

    # ---- BlockSpecs: stream activations, keep weights/biases resident ----
    x_spec = pl.BlockSpec((TB, Dp), lambda i: (i, 0))
    o_spec = pl.BlockSpec((TB, Dp), lambda i: (i, 0))

    def _wb_specs(buffered):
        specs = []
        for ip, op in pdims:
            for shape in ((ip, op), (1, op)):
                if buffered:
                    # Constant index_map ⇒ one buffer is enough; halves
                    # resident-weight VMEM vs. the default double-buffering.
                    specs.append(pl.BlockSpec(shape, lambda i: (0, 0),
                                              pipeline_mode=pl.Buffered(1)))
                else:
                    specs.append(pl.BlockSpec(shape, lambda i: (0, 0)))
        return specs

    # ---- VMEM budget (clamped to this chip) + cost estimate ----
    w_bytes = sum(ip * op * itm for ip, op in pdims)
    b_bytes = sum(op * 4 for _, op in pdims)
    vmem_est = (w_bytes + b_bytes                 # resident weights, 1 buffer
                + 2 * TB * Dp * itm               # double-buffered input tile
                + 2 * TB * Dp * oitm              # double-buffered output tile
                + TB * (Dp + Dp // 2) * 4)        # peak live f32 intermediates
    vmem_limit = int(min(vmem_est * 1.5 + (2 << 20), vmem_cap - (8 << 20)))
    vmem_limit = max(vmem_limit, 16 << 20)
    # TODO(synk): when single-buffered weights + activation tiles exceed ~70%
    # of this chip's VMEM (v7x: roughly D >= 3.3k in bf16), add a grid axis
    # that K/N-tiles the DxD/2 and D/2xD layers with a pl.when-initialized
    # f32 VMEM accumulator (mark that axis "arbitrary") instead of keeping
    # them fully resident.

    flops = 2 * Bp * sum(ip * op for ip, op in pdims)
    bytes_accessed = Bp * Dp * itm + w_bytes + b_bytes + Bp * Dp * oitm
    cost = pl.CostEstimate(flops=flops, transcendentals=0,
                           bytes_accessed=bytes_accessed)

    def _run(buffered):
        return pl.pallas_call(
            mlp_kernel,
            out_shape=jax.ShapeDtypeStruct((Bp, Dp), out_dtype),
            grid_spec=pltpu.PrefetchScalarGridSpec(
                num_scalar_prefetch=0,
                grid=grid,
                in_specs=[x_spec] + _wb_specs(buffered),
                out_specs=o_spec,
            ),
            compiler_params=pltpu.CompilerParams(
                dimension_semantics=("parallel",),
                vmem_limit_bytes=vmem_limit),
            cost_estimate=cost,
        )(x, *padded)

    try:
        out_padded = _run(buffered=True)
    except Exception:
        # Fallback if this jax build rejects pipeline_mode=Buffered(1) on the
        # top-level pallas_call; functionally identical, just 2x weight VMEM.
        out_padded = _run(buffered=False)

    # NOTE: the padded tail rows of the last batch tile hold relu(bias)
    # garbage until this slice — never consume `out_padded` unsliced.
    return out_padded[:B, :D].reshape(B, L, C)


def mlp_reference(X, params, mean, use_normalizer=True):
    """Pure-JAX reference matching the PyTorch module forward."""
    B, L, C = X.shape
    x = X.astype(jnp.float32)
    if use_normalizer:
        x = x - mean
    h = x.reshape(B, L * C)
    (w1, b1, w2, b2, w3, b3, w4, b4, w5, b5, w6, b6) = params
    h = jnp.maximum(h @ w1 + b1, 0.0)
    h = jnp.maximum(h @ w2 + b2, 0.0)
    z = jnp.maximum(h @ w3 + b3, 0.0)
    h = jnp.maximum(z @ w4 + b4, 0.0)
    h = jnp.maximum(h @ w5 + b5, 0.0)
    out = (h @ w6 + b6).reshape(B, L, C)
    if use_normalizer:
        out = out + mean
    return out


if __name__ == "__main__":
    L, C = 8, 4                 # seq_len, num_channels -> D = 32
    latent_space_size = 8
    key = jax.random.PRNGKey(0)
    kx, kp, km, kx2 = jax.random.split(key, 4)

    params, mean = make_mlp_params(L, C, latent_space_size, kp)
    # non-zero mean to exercise the Detrender fold path
    mean = 0.1 * jax.random.normal(km, (1, 1, C), jnp.float32)

    # --- test 1: small batch, f32 compute, tight tolerance ---
    B = 2
    X = jax.random.normal(kx, (B, L, C), jnp.float32)
    out = jax.block_until_ready(
        mlp_forward(X, params, mean, use_normalizer=True,
                    compute_dtype=jnp.float32, force_pallas=True))
    ref = mlp_reference(X, params, mean, use_normalizer=True)
    assert out.shape == (B, L, C)
    assert jnp.allclose(out, ref, atol=1e-5, rtol=1e-5), "f32 mismatch vs reference"

    # --- test 2: multi-tile grid (2 steps), bf16 weights/activations/output ---
    B2 = 512
    X2 = jax.random.normal(kx2, (B2, L, C), jnp.float32)
    out2 = jax.block_until_ready(
        mlp_forward(X2, params, mean, use_normalizer=True,
                    compute_dtype=jnp.bfloat16, force_pallas=True))
    ref2 = mlp_reference(X2, params, mean, use_normalizer=True)
    assert out2.shape == (B2, L, C)
    assert jnp.allclose(out2.astype(jnp.float32), ref2, atol=1e-1, rtol=1e-1), \
        "bf16 mismatch vs reference"

    print("KERNEL_OK")
</pallas_src>

<mosaic_0001>
module attributes {stable_mosaic.version = 11 : i64} {
  func.func @mlp_kernel(%arg0: i32, %arg1: memref<8x128xf32, #tpu.memory_space<vmem>>, %arg2: memref<128x128xf32, #tpu.memory_space<vmem>>, %arg3: memref<1x128xf32, #tpu.memory_space<vmem>>, %arg4: memref<128x128xf32, #tpu.memory_space<vmem>>, %arg5: memref<1x128xf32, #tpu.memory_space<vmem>>, %arg6: memref<128x128xf32, #tpu.memory_space<vmem>>, %arg7: memref<1x128xf32, #tpu.memory_space<vmem>>, %arg8: memref<128x128xf32, #tpu.memory_space<vmem>>, %arg9: memref<1x128xf32, #tpu.memory_space<vmem>>, %arg10: memref<128x128xf32, #tpu.memory_space<vmem>>, %arg11: memref<1x128xf32, #tpu.memory_space<vmem>>, %arg12: memref<128x128xf32, #tpu.memory_space<vmem>>, %arg13: memref<1x128xf32, #tpu.memory_space<vmem>>, %arg14: memref<8x128xf32, #tpu.memory_space<vmem>>) attributes {dimension_semantics = [#tpu.dimension_semantics<parallel>], iteration_bounds = array<i64: 1>, scalar_prefetch = 0 : i64, scratch_operands = 0 : i64, tpu.core_type = #tpu.core_type<tc>, window_params = [{transform_indices = @transform_0, window_bounds = array<i64: 8, 128>}, {pipeline_mode = #tpu.pipeline_mode<synchronous>, transform_indices = @transform_1, window_bounds = array<i64: 128, 128>}, {pipeline_mode = #tpu.pipeline_mode<synchronous>, transform_indices = @transform_2, window_bounds = array<i64: 1, 128>}, {pipeline_mode = #tpu.pipeline_mode<synchronous>, transform_indices = @transform_3, window_bounds = array<i64: 128, 128>}, {pipeline_mode = #tpu.pipeline_mode<synchronous>, transform_indices = @transform_4, window_bounds = array<i64: 1, 128>}, {pipeline_mode = #tpu.pipeline_mode<synchronous>, transform_indices = @transform_5, window_bounds = array<i64: 128, 128>}, {pipeline_mode = #tpu.pipeline_mode<synchronous>, transform_indices = @transform_6, window_bounds = array<i64: 1, 128>}, {pipeline_mode = #tpu.pipeline_mode<synchronous>, transform_indices = @transform_7, window_bounds = array<i64: 128, 128>}, {pipeline_mode = #tpu.pipeline_mode<synchronous>, transform_indices = @transform_8, window_bounds = array<i64: 1, 128>}, {pipeline_mode = #tpu.pipeline_mode<synchronous>, transform_indices = @transform_9, window_bounds = array<i64: 128, 128>}, {pipeline_mode = #tpu.pipeline_mode<synchronous>, transform_indices = @transform_10, window_bounds = array<i64: 1, 128>}, {pipeline_mode = #tpu.pipeline_mode<synchronous>, transform_indices = @transform_11, window_bounds = array<i64: 128, 128>}, {pipeline_mode = #tpu.pipeline_mode<synchronous>, transform_indices = @transform_12, window_bounds = array<i64: 1, 128>}, {transform_indices = @transform_13, window_bounds = array<i64: 8, 128>}]} {
    %c0 = arith.constant 0 : index
    %c0_0 = arith.constant 0 : index
    %0 = vector.load %arg1[%c0, %c0_0] : memref<8x128xf32, #tpu.memory_space<vmem>>, vector<8x128xf32>
    %c0_1 = arith.constant 0 : index
    %c0_2 = arith.constant 0 : index
    %1 = vector.load %arg2[%c0_1, %c0_2] : memref<128x128xf32, #tpu.memory_space<vmem>>, vector<128x128xf32>
    %cst = arith.constant dense<0.000000e+00> : vector<8x128xf32>
    %2 = tpu.matmul %0, %1, %cst {dimension_numbers = #tpu.dot_dimension_numbers<[1], [0], [0], [1], [0, 0, 1, 1], [], []>} : vector<8x128xf32>, vector<128x128xf32>, vector<8x128xf32> -> vector<8x128xf32>
    %c0_3 = arith.constant 0 : index
    %c0_4 = arith.constant 0 : index
    %3 = vector.load %arg3[%c0_3, %c0_4] : memref<1x128xf32, #tpu.memory_space<vmem>>, vector<1x128xf32>
    %4 = vector.broadcast %3 : vector<1x128xf32> to vector<8x128xf32>
    %5 = arith.addf %2, %4 : vector<8x128xf32>
    %cst_5 = arith.constant 0.000000e+00 : f32
    %6 = vector.broadcast %cst_5 : f32 to vector<8x128xf32>
    %7 = arith.maximumf %5, %6 : vector<8x128xf32>
    %c0_6 = arith.constant 0 : index
    %c0_7 = arith.constant 0 : index
    %8 = vector.load %arg4[%c0_6, %c0_7] : memref<128x128xf32, #tpu.memory_space<vmem>>, vector<128x128xf32>
    %cst_8 = arith.constant dense<0.000000e+00> : vector<8x128xf32>
    %9 = tpu.matmul %7, %8, %cst_8 {dimension_numbers = #tpu.dot_dimension_numbers<[1], [0], [0], [1], [0, 0, 1, 1], [], []>} : vector<8x128xf32>, vector<128x128xf32>, vector<8x128xf32> -> vector<8x128xf32>
    %c0_9 = arith.constant 0 : index
    %c0_10 = arith.constant 0 : index
    %10 = vector.load %arg5[%c0_9, %c0_10] : memref<1x128xf32, #tpu.memory_space<vmem>>, vector<1x128xf32>
    %11 = vector.broadcast %10 : vector<1x128xf32> to vector<8x128xf32>
    %12 = arith.addf %9, %11 : vector<8x128xf32>
    %cst_11 = arith.constant 0.000000e+00 : f32
    %13 = vector.broadcast %cst_11 : f32 to vector<8x128xf32>
    %14 = arith.maximumf %12, %13 : vector<8x128xf32>
    %c0_12 = arith.constant 0 : index
    %c0_13 = arith.constant 0 : index
    %15 = vector.load %arg6[%c0_12, %c0_13] : memref<128x128xf32, #tpu.memory_space<vmem>>, vector<128x128xf32>
    %cst_14 = arith.constant dense<0.000000e+00> : vector<8x128xf32>
    %16 = tpu.matmul %14, %15, %cst_14 {dimension_numbers = #tpu.dot_dimension_numbers<[1], [0], [0], [1], [0, 0, 1, 1], [], []>} : vector<8x128xf32>, vector<128x128xf32>, vector<8x128xf32> -> vector<8x128xf32>
    %c0_15 = arith.constant 0 : index
    %c0_16 = arith.constant 0 : index
    %17 = vector.load %arg7[%c0_15, %c0_16] : memref<1x128xf32, #tpu.memory_space<vmem>>, vector<1x128xf32>
    %18 = vector.broadcast %17 : vector<1x128xf32> to vector<8x128xf32>
    %19 = arith.addf %16, %18 : vector<8x128xf32>
    %cst_17 = arith.constant 0.000000e+00 : f32
    %20 = vector.broadcast %cst_17 : f32 to vector<8x128xf32>
    %21 = arith.maximumf %19, %20 : vector<8x128xf32>
    %c0_18 = arith.constant 0 : index
    %c0_19 = arith.constant 0 : index
    %22 = vector.load %arg8[%c0_18, %c0_19] : memref<128x128xf32, #tpu.memory_space<vmem>>, vector<128x128xf32>
    %cst_20 = arith.constant dense<0.000000e+00> : vector<8x128xf32>
    %23 = tpu.matmul %21, %22, %cst_20 {dimension_numbers = #tpu.dot_dimension_numbers<[1], [0], [0], [1], [0, 0, 1, 1], [], []>} : vector<8x128xf32>, vector<128x128xf32>, vector<8x128xf32> -> vector<8x128xf32>
    %c0_21 = arith.constant 0 : index
    %c0_22 = arith.constant 0 : index
    %24 = vector.load %arg9[%c0_21, %c0_22] : memref<1x128xf32, #tpu.memory_space<vmem>>, vector<1x128xf32>
    %25 = vector.broadcast %24 : vector<1x128xf32> to vector<8x128xf32>
    %26 = arith.addf %23, %25 : vector<8x128xf32>
    %cst_23 = arith.constant 0.000000e+00 : f32
    %27 = vector.broadcast %cst_23 : f32 to vector<8x128xf32>
    %28 = arith.maximumf %26, %27 : vector<8x128xf32>
    %c0_24 = arith.constant 0 : index
    %c0_25 = arith.constant 0 : index
    %29 = vector.load %arg10[%c0_24, %c0_25] : memref<128x128xf32, #tpu.memory_space<vmem>>, vector<128x128xf32>
    %cst_26 = arith.constant dense<0.000000e+00> : vector<8x128xf32>
    %30 = tpu.matmul %28, %29, %cst_26 {dimension_numbers = #tpu.dot_dimension_numbers<[1], [0], [0], [1], [0, 0, 1, 1], [], []>} : vector<8x128xf32>, vector<128x128xf32>, vector<8x128xf32> -> vector<8x128xf32>
    %c0_27 = arith.constant 0 : index
    %c0_28 = arith.constant 0 : index
    %31 = vector.load %arg11[%c0_27, %c0_28] : memref<1x128xf32, #tpu.memory_space<vmem>>, vector<1x128xf32>
    %32 = vector.broadcast %31 : vector<1x128xf32> to vector<8x128xf32>
    %33 = arith.addf %30, %32 : vector<8x128xf32>
    %cst_29 = arith.constant 0.000000e+00 : f32
    %34 = vector.broadcast %cst_29 : f32 to vector<8x128xf32>
    %35 = arith.maximumf %33, %34 : vector<8x128xf32>
    %c0_30 = arith.constant 0 : index
    %c0_31 = arith.constant 0 : index
    %36 = vector.load %arg12[%c0_30, %c0_31] : memref<128x128xf32, #tpu.memory_space<vmem>>, vector<128x128xf32>
    %cst_32 = arith.constant dense<0.000000e+00> : vector<8x128xf32>
    %37 = tpu.matmul %35, %36, %cst_32 {dimension_numbers = #tpu.dot_dimension_numbers<[1], [0], [0], [1], [0, 0, 1, 1], [], []>} : vector<8x128xf32>, vector<128x128xf32>, vector<8x128xf32> -> vector<8x128xf32>
    %c0_33 = arith.constant 0 : index
    %c0_34 = arith.constant 0 : index
    %38 = vector.load %arg13[%c0_33, %c0_34] : memref<1x128xf32, #tpu.memory_space<vmem>>, vector<1x128xf32>
    %39 = vector.broadcast %38 : vector<1x128xf32> to vector<8x128xf32>
    %40 = arith.addf %37, %39 : vector<8x128xf32>
    %c0_35 = arith.constant 0 : index
    %c0_36 = arith.constant 0 : index
    %41 = vector.load %arg14[%c0_35, %c0_36] : memref<8x128xf32, #tpu.memory_space<vmem>>, vector<8x128xf32>
    tpu.vector_store %arg14[%c0_35, %c0_36], %40 {strides = array<i32>} : memref<8x128xf32, #tpu.memory_space<vmem>>, vector<8x128xf32>,
    return
  }
  func.func @transform_0(%arg0: i32) -> (i32, i32) {
    %c0_i32 = arith.constant 0 : i32
    %c0_i32_0 = arith.constant 0 : i32
    return %arg0, %c0_i32 : i32, i32
  }
  func.func @transform_1(%arg0: i32) -> (i32, i32) {
    %c0_i32 = arith.constant 0 : i32
    %c0_i32_0 = arith.constant 0 : i32
    %c0_i32_1 = arith.constant 0 : i32
    return %c0_i32, %c0_i32_0 : i32, i32
  }
  func.func @transform_2(%arg0: i32) -> (i32, i32) {
    %c0_i32 = arith.constant 0 : i32
    %c0_i32_0 = arith.constant 0 : i32
    %c0_i32_1 = arith.constant 0 : i32
    return %c0_i32, %c0_i32_0 : i32, i32
  }
  func.func @transform_3(%arg0: i32) -> (i32, i32) {
    %c0_i32 = arith.constant 0 : i32
    %c0_i32_0 = arith.constant 0 : i32
    %c0_i32_1 = arith.constant 0 : i32
    return %c0_i32, %c0_i32_0 : i32, i32
  }
  func.func @transform_4(%arg0: i32) -> (i32, i32) {
    %c0_i32 = arith.constant 0 : i32
    %c0_i32_0 = arith.constant 0 : i32
    %c0_i32_1 = arith.constant 0 : i32
    return %c0_i32, %c0_i32_0 : i32, i32
  }
  func.func @transform_5(%arg0: i32) -> (i32, i32) {
    %c0_i32 = arith.constant 0 : i32
    %c0_i32_0 = arith.constant 0 : i32
    %c0_i32_1 = arith.constant 0 : i32
    return %c0_i32, %c0_i32_0 : i32, i32
  }
  func.func @transform_6(%arg0: i32) -> (i32, i32) {
    %c0_i32 = arith.constant 0 : i32
    %c0_i32_0 = arith.constant 0 : i32
    %c0_i32_1 = arith.constant 0 : i32
    return %c0_i32, %c0_i32_0 : i32, i32
  }
  func.func @transform_7(%arg0: i32) -> (i32, i32) {
    %c0_i32 = arith.constant 0 : i32
    %c0_i32_0 = arith.constant 0 : i32
    %c0_i32_1 = arith.constant 0 : i32
    return %c0_i32, %c0_i32_0 : i32, i32
  }
  func.func @transform_8(%arg0: i32) -> (i32, i32) {
    %c0_i32 = arith.constant 0 : i32
    %c0_i32_0 = arith.constant 0 : i32
    %c0_i32_1 = arith.constant 0 : i32
    return %c0_i32, %c0_i32_0 : i32, i32
  }
  func.func @transform_9(%arg0: i32) -> (i32, i32) {
    %c0_i32 = arith.constant 0 : i32
    %c0_i32_0 = arith.constant 0 : i32
    %c0_i32_1 = arith.constant 0 : i32
    return %c0_i32, %c0_i32_0 : i32, i32
  }
  func.func @transform_10(%arg0: i32) -> (i32, i32) {
    %c0_i32 = arith.constant 0 : i32
    %c0_i32_0 = arith.constant 0 : i32
    %c0_i32_1 = arith.constant 0 : i32
    return %c0_i32, %c0_i32_0 : i32, i32
  }
  func.func @transform_11(%arg0: i32) -> (i32, i32) {
    %c0_i32 = arith.constant 0 : i32
    %c0_i32_0 = arith.constant 0 : i32
    %c0_i32_1 = arith.constant 0 : i32
    return %c0_i32, %c0_i32_0 : i32, i32
  }
  func.func @transform_12(%arg0: i32) -> (i32, i32) {
    %c0_i32 = arith.constant 0 : i32
    %c0_i32_0 = arith.constant 0 : i32
    %c0_i32_1 = arith.constant 0 : i32
    return %c0_i32, %c0_i32_0 : i32, i32
  }
  func.func @transform_13(%arg0: i32) -> (i32, i32) {
    %c0_i32 = arith.constant 0 : i32
    %c0_i32_0 = arith.constant 0 : i32
    return %arg0, %c0_i32 : i32, i32
  }
}

module attributes {stable_mosaic.version = 11 : i64} {
  func.func @mlp_kernel(%arg0: i32, %arg1: memref<8x128xf32, #tpu.memory_space<vmem>>, %arg2: memref<128x128xf32, #tpu.memory_space<vmem>>, %arg3: memref<1x128xf32, #tpu.memory_space<vmem>>, %arg4: memref<128x128xf32, #tpu.memory_space<vmem>>, %arg5: memref<1x128xf32, #tpu.memory_space<vmem>>, %arg6: memref<128x128xf32, #tpu.memory_space<vmem>>, %arg7: memref<1x128xf32, #tpu.memory_space<vmem>>, %arg8: memref<128x128xf32, #tpu.memory_space<vmem>>, %arg9: memref<1x128xf32, #tpu.memory_space<vmem>>, %arg10: memref<128x128xf32, #tpu.memory_space<vmem>>, %arg11: memref<1x128xf32, #tpu.memory_space<vmem>>, %arg12: memref<128x128xf32, #tpu.memory_space<vmem>>, %arg13: memref<1x128xf32, #tpu.memory_space<vmem>>, %arg14: memref<8x128xf32, #tpu.memory_space<vmem>>) attributes {dimension_semantics = [#tpu.dimension_semantics<parallel>], iteration_bounds = array<i64: 1>, scalar_prefetch = 0 : i64, scratch_operands = 0 : i64, tpu.core_type = #tpu.core_type<tc>, window_params = [{transform_indices = @transform_0, window_bounds = array<i64: 8, 128>}, {pipeline_mode = #tpu.pipeline_mode<synchronous>, transform_indices = @transform_1, window_bounds = array<i64: 128, 128>}, {pipeline_mode = #tpu.pipeline_mode<synchronous>, transform_indices = @transform_2, window_bounds = array<i64: 1, 128>}, {pipeline_mode = #tpu.pipeline_mode<synchronous>, transform_indices = @transform_3, window_bounds = array<i64: 128, 128>}, {pipeline_mode = #tpu.pipeline_mode<synchronous>, transform_indices = @transform_4, window_bounds = array<i64: 1, 128>}, {pipeline_mode = #tpu.pipeline_mode<synchronous>, transform_indices = @transform_5, window_bounds = array<i64: 128, 128>}, {pipeline_mode = #tpu.pipeline_mode<synchronous>, transform_indices = @transform_6, window_bounds = array<i64: 1, 128>}, {pipeline_mode = #tpu.pipeline_mode<synchronous>, transform_indices = @transform_7, window_bounds = array<i64: 128, 128>}, {pipeline_mode = #tpu.pipeline_mode<synchronous>, transform_indices = @transform_8, window_bounds = array<i64: 1, 128>}, {pipeline_mode = #tpu.pipeline_mode<synchronous>, transform_indices = @transform_9, window_bounds = array<i64: 128, 128>}, {pipeline_mode = #tpu.pipeline_mode<synchronous>, transform_indices = @transform_10, window_bounds = array<i64: 1, 128>}, {pipeline_mode = #tpu.pipeline_mode<synchronous>, transform_indices = @transform_11, window_bounds = array<i64: 128, 128>}, {pipeline_mode = #tpu.pipeline_mode<synchronous>, transform_indices = @transform_12, window_bounds = array<i64: 1, 128>}, {transform_indices = @transform_13, window_bounds = array<i64: 8, 128>}]} {
    %c0 = arith.constant 0 : index
    %c0_0 = arith.constant 0 : index
    %0 = vector.load %arg1[%c0, %c0_0] : memref<8x128xf32, #tpu.memory_space<vmem>>, vector<8x128xf32>
    %c0_1 = arith.constant 0 : index
    %c0_2 = arith.constant 0 : index
    %1 = vector.load %arg2[%c0_1, %c0_2] : memref<128x128xf32, #tpu.memory_space<vmem>>, vector<128x128xf32>
    %cst = arith.constant dense<0.000000e+00> : vector<8x128xf32>
    %2 = tpu.matmul %0, %1, %cst {dimension_numbers = #tpu.dot_dimension_numbers<[1], [0], [0], [1], [0, 0, 1, 1], [], []>} : vector<8x128xf32>, vector<128x128xf32>, vector<8x128xf32> -> vector<8x128xf32>
    %c0_3 = arith.constant 0 : index
    %c0_4 = arith.constant 0 : index
    %3 = vector.load %arg3[%c0_3, %c0_4] : memref<1x128xf32, #tpu.memory_space<vmem>>, vector<1x128xf32>
    %4 = vector.broadcast %3 : vector<1x128xf32> to vector<8x128xf32>
    %5 = arith.addf %2, %4 : vector<8x128xf32>
    %cst_5 = arith.constant 0.000000e+00 : f32
    %6 = vector.broadcast %cst_5 : f32 to vector<8x128xf32>
    %7 = arith.maximumf %5, %6 : vector<8x128xf32>
    %c0_6 = arith.constant 0 : index
    %c0_7 = arith.constant 0 : index
    %8 = vector.load %arg4[%c0_6, %c0_7] : memref<128x128xf32, #tpu.memory_space<vmem>>, vector<128x128xf32>
    %cst_8 = arith.constant dense<0.000000e+00> : vector<8x128xf32>
    %9 = tpu.matmul %7, %8, %cst_8 {dimension_numbers = #tpu.dot_dimension_numbers<[1], [0], [0], [1], [0, 0, 1, 1], [], []>} : vector<8x128xf32>, vector<128x128xf32>, vector<8x128xf32> -> vector<8x128xf32>
    %c0_9 = arith.constant 0 : index
    %c0_10 = arith.constant 0 : index
    %10 = vector.load %arg5[%c0_9, %c0_10] : memref<1x128xf32, #tpu.memory_space<vmem>>, vector<1x128xf32>
    %11 = vector.broadcast %10 : vector<1x128xf32> to vector<8x128xf32>
    %12 = arith.addf %9, %11 : vector<8x128xf32>
    %cst_11 = arith.constant 0.000000e+00 : f32
    %13 = vector.broadcast %cst_11 : f32 to vector<8x128xf32>
    %14 = arith.maximumf %12, %13 : vector<8x128xf32>
    %c0_12 = arith.constant 0 : index
    %c0_13 = arith.constant 0 : index
    %15 = vector.load %arg6[%c0_12, %c0_13] : memref<128x128xf32, #tpu.memory_space<vmem>>, vector<128x128xf32>
    %cst_14 = arith.constant dense<0.000000e+00> : vector<8x128xf32>
    %16 = tpu.matmul %14, %15, %cst_14 {dimension_numbers = #tpu.dot_dimension_numbers<[1], [0], [0], [1], [0, 0, 1, 1], [], []>} : vector<8x128xf32>, vector<128x128xf32>, vector<8x128xf32> -> vector<8x128xf32>
    %c0_15 = arith.constant 0 : index
    %c0_16 = arith.constant 0 : index
    %17 = vector.load %arg7[%c0_15, %c0_16] : memref<1x128xf32, #tpu.memory_space<vmem>>, vector<1x128xf32>
    %18 = vector.broadcast %17 : vector<1x128xf32> to vector<8x128xf32>
    %19 = arith.addf %16, %18 : vector<8x128xf32>
    %cst_17 = arith.constant 0.000000e+00 : f32
    %20 = vector.broadcast %cst_17 : f32 to vector<8x128xf32>
    %21 = arith.maximumf %19, %20 : vector<8x128xf32>
    %c0_18 = arith.constant 0 : index
    %c0_19 = arith.constant 0 : index
    %22 = vector.load %arg8[%c0_18, %c0_19] : memref<128x128xf32, #tpu.memory_space<vmem>>, vector<128x128xf32>
    %cst_20 = arith.constant dense<0.000000e+00> : vector<8x128xf32>
    %23 = tpu.matmul %21, %22, %cst_20 {dimension_numbers = #tpu.dot_dimension_numbers<[1], [0], [0], [1], [0, 0, 1, 1], [], []>} : vector<8x128xf32>, vector<128x128xf32>, vector<8x128xf32> -> vector<8x128xf32>
    %c0_21 = arith.constant 0 : index
    %c0_22 = arith.constant 0 : index
    %24 = vector.load %arg9[%c0_21, %c0_22] : memref<1x128xf32, #tpu.memory_space<vmem>>, vector<1x128xf32>
    %25 = vector.broadcast %24 : vector<1x128xf32> to vector<8x128xf32>
    %26 = arith.addf %23, %25 : vector<8x128xf32>
    %cst_23 = arith.constant 0.000000e+00 : f32
    %27 = vector.broadcast %cst_23 : f32 to vector<8x128xf32>
    %28 = arith.maximumf %26, %27 : vector<8x128xf32>
    %c0_24 = arith.constant 0 : index
    %c0_25 = arith.constant 0 : index
    %29 = vector.load %arg10[%c0_24, %c0_25] : memref<128x128xf32, #tpu.memory_space<vmem>>, vector<128x128xf32>
    %cst_26 = arith.constant dense<0.000000e+00> : vector<8x128xf32>
    %30 = tpu.matmul %28, %29, %cst_26 {dimension_numbers = #tpu.dot_dimension_numbers<[1], [0], [0], [1], [0, 0, 1, 1], [], []>} : vector<8x128xf32>, vector<128x128xf32>, vector<8x128xf32> -> vector<8x128xf32>
    %c0_27 = arith.constant 0 : index
    %c0_28 = arith.constant 0 : index
    %31 = vector.load %arg11[%c0_27, %c0_28] : memref<1x128xf32, #tpu.memory_space<vmem>>, vector<1x128xf32>
    %32 = vector.broadcast %31 : vector<1x128xf32> to vector<8x128xf32>
    %33 = arith.addf %30, %32 : vector<8x128xf32>
    %cst_29 = arith.constant 0.000000e+00 : f32
    %34 = vector.broadcast %cst_29 : f32 to vector<8x128xf32>
    %35 = arith.maximumf %33, %34 : vector<8x128xf32>
    %c0_30 = arith.constant 0 : index
    %c0_31 = arith.constant 0 : index
    %36 = vector.load %arg12[%c0_30, %c0_31] : memref<128x128xf32, #tpu.memory_space<vmem>>, vector<128x128xf32>
    %cst_32 = arith.constant dense<0.000000e+00> : vector<8x128xf32>
    %37 = tpu.matmul %35, %36, %cst_32 {dimension_numbers = #tpu.dot_dimension_numbers<[1], [0], [0], [1], [0, 0, 1, 1], [], []>} : vector<8x128xf32>, vector<128x128xf32>, vector<8x128xf32> -> vector<8x128xf32>
    %c0_33 = arith.constant 0 : index
    %c0_34 = arith.constant 0 : index
    %38 = vector.load %arg13[%c0_33, %c0_34] : memref<1x128xf32, #tpu.memory_space<vmem>>, vector<1x128xf32>
    %39 = vector.broadcast %38 : vector<1x128xf32> to vector<8x128xf32>
    %40 = arith.addf %37, %39 : vector<8x128xf32>
    %c0_35 = arith.constant 0 : index
    %c0_36 = arith.constant 0 : index
    %41 = vector.load %arg14[%c0_35, %c0_36] : memref<8x128xf32, #tpu.memory_space<vmem>>, vector<8x128xf32>
    tpu.vector_store %arg14[%c0_35, %c0_36], %40 {strides = array<i32>} : memref<8x128xf32, #tpu.memory_space<vmem>>, vector<8x128xf32>,
    return
  }
  func.func @transform_0(%arg0: i32) -> (i32, i32) {
    %c0_i32 = arith.constant 0 : i32
    %c0_i32_0 = arith.constant 0 : i32
    return %arg0, %c0_i32 : i32, i32
  }
  func.func @transform_1(%arg0: i32) -> (i32, i32) {
    %c0_i32 = arith.constant 0 : i32
    %c0_i32_0 = arith.constant 0 : i32
    %c0_i32_1 = arith.constant 0 : i32
    return %c0_i32, %c0_i32_0 : i32, i32
  }
  func.func @transform_2(%arg0: i32) -> (i32, i32) {
    %c0_i32 = arith.constant 0 : i32
    %c0_i32_0 = arith.constant 0 : i32
    %c0_i32_1 = arith.constant 0 : i32
    return %c0_i32, %c0_i32_0 : i32, i32
  }
  func.func @transform_3(%arg0: i32) -> (i32, i32) {
    %c0_i32 = arith.constant 0 : i32
    %c0_i32_0 = arith.constant 0 : i32
    %c0_i32_1 = arith.constant 0 : i32
    return %c0_i32, %c0_i32_0 : i32, i32
  }
  func.func @transform_4(%arg0: i32) -> (i32, i32) {
    %c0_i32 = arith.constant 0 : i32
    %c0_i32_0 = arith.constant 0 : i32
    %c0_i32_1 = arith.constant 0 : i32
    return %c0_i32, %c0_i32_0 : i32, i32
  }
  func.func @transform_5(%arg0: i32) -> (i32, i32) {
    %c0_i32 = arith.constant 0 : i32
    %c0_i32_0 = arith.constant 0 : i32
    %c0_i32_1 = arith.constant 0 : i32
    return %c0_i32, %c0_i32_0 : i32, i32
  }
  func.func @transform_6(%arg0: i32) -> (i32, i32) {
    %c0_i32 = arith.constant 0 : i32
    %c0_i32_0 = arith.constant 0 : i32
    %c0_i32_1 = arith.constant 0 : i32
    return %c0_i32, %c0_i32_0 : i32, i32
  }
  func.func @transform_7(%arg0: i32) -> (i32, i32) {
    %c0_i32 = arith.constant 0 : i32
    %c0_i32_0 = arith.constant 0 : i32
    %c0_i32_1 = arith.constant 0 : i32
    return %c0_i32, %c0_i32_0 : i32, i32
  }
  func.func @transform_8(%arg0: i32) -> (i32, i32) {
    %c0_i32 = arith.constant 0 : i32
    %c0_i32_0 = arith.constant 0 : i32
    %c0_i32_1 = arith.constant 0 : i32
    return %c0_i32, %c0_i32_0 : i32, i32
  }
  func.func @transform_9(%arg0: i32) -> (i32, i32) {
    %c0_i32 = arith.constant 0 : i32
    %c0_i32_0 = arith.constant 0 : i32
    %c0_i32_1 = arith.constant 0 : i32
    return %c0_i32, %c0_i32_0 : i32, i32
  }
  func.func @transform_10(%arg0: i32) -> (i32, i32) {
    %c0_i32 = arith.constant 0 : i32
    %c0_i32_0 = arith.constant 0 : i32
    %c0_i32_1 = arith.constant 0 : i32
    return %c0_i32, %c0_i32_0 : i32, i32
  }
  func.func @transform_11(%arg0: i32) -> (i32, i32) {
    %c0_i32 = arith.constant 0 : i32
    %c0_i32_0 = arith.constant 0 : i32
    %c0_i32_1 = arith.constant 0 : i32
    return %c0_i32, %c0_i32_0 : i32, i32
  }
  func.func @transform_12(%arg0: i32) -> (i32, i32) {
    %c0_i32 = arith.constant 0 : i32
    %c0_i32_0 = arith.constant 0 : i32
    %c0_i32_1 = arith.constant 0 : i32
    return %c0_i32, %c0_i32_0 : i32, i32
  }
  func.func @transform_13(%arg0: i32) -> (i32, i32) {
    %c0_i32 = arith.constant 0 : i32
    %c0_i32_0 = arith.constant 0 : i32
    return %arg0, %c0_i32 : i32, i32
  }
}

</mosaic_0001>

<llo_original>
// kernel: tpu_custom_call.1
$region0: #{tpu_custom_call.1}
  #allocation0 [shape = 'u32[]', space=smem, size = 0x4, offset = 0x4, fixed_abs, tag = 'smem constant byte address 0x4 - core index']
  #allocation1 [shape = 'u32[144,128]{1,0:T(1,128)}', space=vmem, size = 0x12000, scoped, tag = 'internal scratch']
  %s0 = inlined_call_operand.hbm [shape: f32[8,128], index: 0, kind: input, shape index: {}]
  %s1 = inlined_call_operand.hbm [shape: f32[128,128], index: 1, kind: input, shape index: {}]
  %s2 = inlined_call_operand.vmem [shape: f32[1,128], index: 2, kind: input, shape index: {}]
  %s3 = inlined_call_operand.hbm [shape: f32[128,128], index: 3, kind: input, shape index: {}]
  %s4 = inlined_call_operand.vmem [shape: f32[1,128], index: 4, kind: input, shape index: {}]
  %s5 = inlined_call_operand.hbm [shape: f32[128,128], index: 5, kind: input, shape index: {}]
  %s6 = inlined_call_operand.vmem [shape: f32[1,128], index: 6, kind: input, shape index: {}]
  %s7 = inlined_call_operand.hbm [shape: f32[128,128], index: 7, kind: input, shape index: {}]
  %s8 = inlined_call_operand.vmem [shape: f32[1,128], index: 8, kind: input, shape index: {}]
  %s9 = inlined_call_operand.hbm [shape: f32[128,128], index: 9, kind: input, shape index: {}]
  %s10 = inlined_call_operand.vmem [shape: f32[1,128], index: 10, kind: input, shape index: {}]
  %s11 = inlined_call_operand.hbm [shape: f32[128,128], index: 11, kind: input, shape index: {}]
  %s12 = inlined_call_operand.vmem [shape: f32[1,128], index: 12, kind: input, shape index: {}]
  %s13 = inlined_call_operand.hbm [shape: f32[8,128], index: 13, kind: output, shape index: {}]
  %s14 = sld [smem:[#allocation0]]
  $region90: #{tpu_custom_call.1} parent=0
    _
  %s16 = ssub.s32 1, %s14
  %s17 = scalar_select 0, %s16, %s14
  $region1: #{tpu_custom_call.1} parent=0
    #allocation2 [shape = 'u8[4096]{0}', space=vmem, size = 0x1000, scoped, tag = 'input window, operand 0, single buffered']
    #allocation3 [shape = 's32[1]{0}', space=sflag, size = 0x4, scoped, tag = 'scoped memory for tpu_custom_call.1']
    #allocation4 [shape = 's32[1]{0}', space=sflag, size = 0x4, scoped, tag = 'scoped memory for tpu_custom_call.1']
    #allocation5 [shape = 'u8[65536]{0}', space=vmem, size = 0x10000, scoped, tag = 'input window, operand 1, single buffered']
    #allocation6 [shape = 's32[1]{0}', space=sflag, size = 0x4, scoped, tag = 'scoped memory for tpu_custom_call.1']
    #allocation7 [shape = 'u8[65536]{0}', space=vmem, size = 0x10000, scoped, tag = 'input window, operand 3, single buffered']
    #allocation8 [shape = 'u8[65536]{0}', space=vmem, size = 0x10000, scoped, tag = 'input window, operand 5, single buffered']
    #allocation9 [shape = 's32[1]{0}', space=sflag, size = 0x4, scoped, tag = 'scoped memory for tpu_custom_call.1']
    #allocation10 [shape = 'u8[65536]{0}', space=vmem, size = 0x10000, scoped, tag = 'input window, operand 7, single buffered']
    #allocation11 [shape = 'u8[65536]{0}', space=vmem, size = 0x10000, scoped, tag = 'input window, operand 9, single buffered']
    #allocation12 [shape = 's32[1]{0}', space=sflag, size = 0x4, scoped, tag = 'scoped memory for tpu_custom_call.1']
    #allocation13 [shape = 'u8[65536]{0}', space=vmem, size = 0x10000, scoped, tag = 'input window, operand 11, single buffered']
    #allocation14 [shape = 'u8[4096]{0}', space=vmem, size = 0x1000, scoped, tag = 'output window, operand 0, single buffered']
    %18 = vsyncpa [#allocation3], 0
    %19 = vsyncpa [#allocation6], 0
    %20 = vsyncpa [#allocation9], 0
    %21 = vsyncpa [#allocation12], 0
    %22 = vsyncpa [#allocation4], 0
    // Predicated region
    $region2: #{tpu_custom_call.1} parent=1 // pred_check
      _
    $region3: #{tpu_custom_call.1} parent=1 // pred_check_branch
      %24 = sbr.rel (0) target = $region5
    $region4: #{tpu_custom_call.1} parent=1 // pred_region
      %s26 = ssub.s32 128, 128
      %27 = vsyncadd [#allocation3], %s26
      %s29 = sshll.u32 [#allocation2], 4
      %s30 = int_to_ptr.vmem [resolvable:$true] %s29
      %32 = dma.hbm_to_vmem [thread:$0]  %s0, 128, %s30, [#allocation3]
    $region5: #{tpu_custom_call.1} parent=1 // pred_fallthru
      _
    // Predicated region
    $region6: #{tpu_custom_call.1} parent=1 // pred_check
      _
    $region7: #{tpu_custom_call.1} parent=1 // pred_check_branch
      %34 = sbr.rel (0) target = $region9
    $region8: #{tpu_custom_call.1} parent=1 // pred_region
      %s36 = ssub.s32 2048, 2048
      %37 = vsyncadd [#allocation6], %s36
      %s38 = sshll.u32 [#allocation5], 4
      %s39 = int_to_ptr.vmem [resolvable:$true] %s38
      %44 = dma.hbm_to_vmem [thread:$0]  %s1, 2048, %s39, [#allocation6], 128, 128, 8
    $region9: #{tpu_custom_call.1} parent=1 // pred_fallthru
      _
    // Predicated region
    $region10: #{tpu_custom_call.1} parent=1 // pred_check
      _
    $region11: #{tpu_custom_call.1} parent=1 // pred_check_branch
      %46 = sbr.rel (0) target = $region13
    $region12: #{tpu_custom_call.1} parent=1 // pred_region
      _
    $region13: #{tpu_custom_call.1} parent=1 // pred_fallthru
      _
    // Predicated region
    $region14: #{tpu_custom_call.1} parent=1 // pred_check
      _
    $region15: #{tpu_custom_call.1} parent=1 // pred_check_branch
      %48 = sbr.rel (0) target = $region17
    $region16: #{tpu_custom_call.1} parent=1 // pred_region
      %s50 = ssub.s32 2048, 2048
      %51 = vsyncadd [#allocation6], %s50
      %s52 = sshll.u32 [#allocation7], 4
      %s53 = int_to_ptr.vmem [resolvable:$true] %s52
      %58 = dma.hbm_to_vmem [thread:$0]  %s3, 2048, %s53, [#allocation6], 128, 128, 8
    $region17: #{tpu_custom_call.1} parent=1 // pred_fallthru
      _
    // Predicated region
    $region18: #{tpu_custom_call.1} parent=1 // pred_check
      _
    $region19: #{tpu_custom_call.1} parent=1 // pred_check_branch
      %60 = sbr.rel (0) target = $region21
    $region20: #{tpu_custom_call.1} parent=1 // pred_region
      _
    $region21: #{tpu_custom_call.1} parent=1 // pred_fallthru
      _
    // Predicated region
    $region22: #{tpu_custom_call.1} parent=1 // pred_check
      _
    $region23: #{tpu_custom_call.1} parent=1 // pred_check_branch
      %62 = sbr.rel (0) target = $region25
    $region24: #{tpu_custom_call.1} parent=1 // pred_region
      %s64 = ssub.s32 2048, 2048
      %65 = vsyncadd [#allocation9], %s64
      %s66 = sshll.u32 [#allocation8], 4
      %s67 = int_to_ptr.vmem [resolvable:$true] %s66
      %72 = dma.hbm_to_vmem [thread:$0]  %s5, 2048, %s67, [#allocation9], 128, 128, 8
    $region25: #{tpu_custom_call.1} parent=1 // pred_fallthru
      _
    // Predicated region
    $region26: #{tpu_custom_call.1} parent=1 // pred_check
      _
    $region27: #{tpu_custom_call.1} parent=1 // pred_check_branch
      %74 = sbr.rel (0) target = $region29
    $region28: #{tpu_custom_call.1} parent=1 // pred_region
      _
    $region29: #{tpu_custom_call.1} parent=1 // pred_fallthru
      _
    // Predicated region
    $region30: #{tpu_custom_call.1} parent=1 // pred_check
      _
    $region31: #{tpu_custom_call.1} parent=1 // pred_check_branch
      %76 = sbr.rel (0) target = $region33
    $region32: #{tpu_custom_call.1} parent=1 // pred_region
      %s78 = ssub.s32 2048, 2048
      %79 = vsyncadd [#allocation9], %s78
      %s80 = sshll.u32 [#allocation10], 4
      %s81 = int_to_ptr.vmem [resolvable:$true] %s80
      %86 = dma.hbm_to_vmem [thread:$0]  %s7, 2048, %s81, [#allocation9], 128, 128, 8
    $region33: #{tpu_custom_call.1} parent=1 // pred_fallthru
      _
    // Predicated region
    $region34: #{tpu_custom_call.1} parent=1 // pred_check
      _
    $region35: #{tpu_custom_call.1} parent=1 // pred_check_branch
      %88 = sbr.rel (0) target = $region37
    $region36: #{tpu_custom_call.1} parent=1 // pred_region
      _
    $region37: #{tpu_custom_call.1} parent=1 // pred_fallthru
      _
    // Predicated region
    $region38: #{tpu_custom_call.1} parent=1 // pred_check
      _
    $region39: #{tpu_custom_call.1} parent=1 // pred_check_branch
      %90 = sbr.rel (0) target = $region41
    $region40: #{tpu_custom_call.1} parent=1 // pred_region
      %s92 = ssub.s32 2048, 2048
      %93 = vsyncadd [#allocation12], %s92
      %s94 = sshll.u32 [#allocation11], 4
      %s95 = int_to_ptr.vmem [resolvable:$true] %s94
      %100 = dma.hbm_to_vmem [thread:$0]  %s9, 2048, %s95, [#allocation12], 128, 128, 8
    $region41: #{tpu_custom_call.1} parent=1 // pred_fallthru
      _
    // Predicated region
    $region42: #{tpu_custom_call.1} parent=1 // pred_check
      _
    $region43: #{tpu_custom_call.1} parent=1 // pred_check_branch
      %102 = sbr.rel (0) target = $region45
    $region44: #{tpu_custom_call.1} parent=1 // pred_region
      _
    $region45: #{tpu_custom_call.1} parent=1 // pred_fallthru
      _
    // Predicated region
    $region46: #{tpu_custom_call.1} parent=1 // pred_check
      _
    $region47: #{tpu_custom_call.1} parent=1 // pred_check_branch
      %104 = sbr.rel (0) target = $region49
    $region48: #{tpu_custom_call.1} parent=1 // pred_region
      %s106 = ssub.s32 2048, 2048
      %107 = vsyncadd [#allocation12], %s106
      %s108 = sshll.u32 [#allocation13], 4
      %s109 = int_to_ptr.vmem [resolvable:$true] %s108
      %114 = dma.hbm_to_vmem [thread:$0]  %s11, 2048, %s109, [#allocation12], 128, 128, 8
    $region49: #{tpu_custom_call.1} parent=1 // pred_fallthru
      _
    // Predicated region
    $region50: #{tpu_custom_call.1} parent=1 // pred_check
      _
    $region51: #{tpu_custom_call.1} parent=1 // pred_check_branch
      %116 = sbr.rel (0) target = $region53
    $region52: #{tpu_custom_call.1} parent=1 // pred_region
      _
    $region53: #{tpu_custom_call.1} parent=1 // pred_fallthru
      _
    // Predicated region
    $region54: #{tpu_custom_call.1} parent=1 // pred_check
      _
    $region55: #{tpu_custom_call.1} parent=1 // pred_check_branch
      %118 = sbr.rel (0) target = $region57
    $region56: #{tpu_custom_call.1} parent=1 // pred_region
      %119 = dma.done [#allocation3], 128
    $region57: #{tpu_custom_call.1} parent=1 // pred_fallthru
      _
    // Predicated region
    $region58: #{tpu_custom_call.1} parent=1 // pred_check
      _
    $region59: #{tpu_custom_call.1} parent=1 // pred_check_branch
      %121 = sbr.rel (0) target = $region61
    $region60: #{tpu_custom_call.1} parent=1 // pred_region
      %122 = dma.done [#allocation6], 2048
    $region61: #{tpu_custom_call.1} parent=1 // pred_fallthru
      _
    // Predicated region
    $region62: #{tpu_custom_call.1} parent=1 // pred_check
      _
    $region63: #{tpu_custom_call.1} parent=1 // pred_check_branch
      %124 = sbr.rel (0) target = $region65
    $region64: #{tpu_custom_call.1} parent=1 // pred_region
      %125 = dma.done [#allocation6], 2048
    $region65: #{tpu_custom_call.1} parent=1 // pred_fallthru
      _
    // Predicated region
    $region66: #{tpu_custom_call.1} parent=1 // pred_check
      _
    $region67: #{tpu_custom_call.1} parent=1 // pred_check_branch
      %127 = sbr.rel (0) target = $region69
    $region68: #{tpu_custom_call.1} parent=1 // pred_region
      %128 = dma.done [#allocation9], 2048
    $region69: #{tpu_custom_call.1} parent=1 // pred_fallthru
      _
    // Predicated region
    $region70: #{tpu_custom_call.1} parent=1 // pred_check
      _
    $region71: #{tpu_custom_call.1} parent=1 // pred_check_branch
      %130 = sbr.rel (0) target = $region73
    $region72: #{tpu_custom_call.1} parent=1 // pred_region
      %131 = dma.done [#allocation9], 2048
    $region73: #{tpu_custom_call.1} parent=1 // pred_fallthru
      _
    // Predicated region
    $region74: #{tpu_custom_call.1} parent=1 // pred_check
      _
    $region75: #{tpu_custom_call.1} parent=1 // pred_check_branch
      %133 = sbr.rel (0) target = $region77
    $region76: #{tpu_custom_call.1} parent=1 // pred_region
      %134 = dma.done [#allocation12], 2048
    $region77: #{tpu_custom_call.1} parent=1 // pred_fallthru
      _
    // Predicated region
    $region78: #{tpu_custom_call.1} parent=1 // pred_check
      _
    $region79: #{tpu_custom_call.1} parent=1 // pred_check_branch
      %136 = sbr.rel (0) target = $region81
    $region80: #{tpu_custom_call.1} parent=1 // pred_region
      %137 = dma.done [#allocation12], 2048
    $region81: #{tpu_custom_call.1} parent=1 // pred_fallthru
      _
    %v138 = vld [vmem:[#allocation2] sm:$0xff]
    %v139 = vld [vmem:[#allocation5] sm:$0xff]
    %v140 = vld [vmem:[#allocation5 + $0x8] sm:$0xff]
    %v141 = vld [vmem:[#allocation5 + $0x10] sm:$0xff]
    %v142 = vld [vmem:[#allocation5 + $0x18] sm:$0xff]
    %v143 = vld [vmem:[#allocation5 + $0x20] sm:$0xff]
    %v144 = vld [vmem:[#allocation5 + $0x28] sm:$0xff]
    %v145 = vld [vmem:[#allocation5 + $0x30] sm:$0xff]
    %v146 = vld [vmem:[#allocation5 + $0x38] sm:$0xff]
    %v147 = vld [vmem:[#allocation5 + $0x40] sm:$0xff]
    %v148 = vld [vmem:[#allocation5 + $0x48] sm:$0xff]
    %v149 = vld [vmem:[#allocation5 + $0x50] sm:$0xff]
    %v150 = vld [vmem:[#allocation5 + $0x58] sm:$0xff]
    %v151 = vld [vmem:[#allocation5 + $0x60] sm:$0xff]
    %v152 = vld [vmem:[#allocation5 + $0x68] sm:$0xff]
    %v153 = vld [vmem:[#allocation5 + $0x70] sm:$0xff]
    %v154 = vld [vmem:[#allocation5 + $0x78] sm:$0xff]
    %v155 = vld [vmem:[%s2] sm:$0x1]
    %v157 = vlaneseq
    %v158 = vshrl.u32 %v157, 7
    %v159 = vsub.s32 0, %v158
    %v160 = vrot.slane %v155, %v159
    %162 = vmatprep.subr.mxu0 0.0
    %163 = vmatpush1.msra.mxu0 %v139
    %164 = vmatprep.subr.mxu0 0.0
    %165 = vmatpush1.msra.mxu0 %v140
    %166 = vmatprep.subr.mxu0 0.0
    %167 = vmatpush1.msra.mxu0 %v141
    %168 = vmatprep.subr.mxu0 0.0
    %169 = vmatpush1.msra.mxu0 %v142
    %170 = vmatprep.subr.mxu0 0.0
    %171 = vmatpush1.msra.mxu0 %v143
    %172 = vmatprep.subr.mxu0 0.0
    %173 = vmatpush1.msra.mxu0 %v144
    %174 = vmatprep.subr.mxu0 0.0
    %175 = vmatpush1.msra.mxu0 %v145
    %176 = vmatprep.subr.mxu0 0.0
    %177 = vmatpush1.msra.mxu0 %v146
    %178 = vmatprep.subr.mxu0 0.0
    %179 = vmatpush1.msra.mxu0 %v147
    %180 = vmatprep.subr.mxu0 0.0
    %181 = vmatpush1.msra.mxu0 %v148
    %182 = vmatprep.subr.mxu0 0.0
    %183 = vmatpush1.msra.mxu0 %v149
    %184 = vmatprep.subr.mxu0 0.0
    %185 = vmatpush1.msra.mxu0 %v150
    %186 = vmatprep.subr.mxu0 0.0
    %187 = vmatpush1.msra.mxu0 %v151
    %188 = vmatprep.subr.mxu0 0.0
    %189 = vmatpush1.msra.mxu0 %v152
    %190 = vmatprep.subr.mxu0 0.0
    %191 = vmatpush1.msra.mxu0 %v153
    %192 = vmatprep.subr.mxu0 0.0
    %193 = vmatpush1.msra.mxu0 %v154
    %194 = vmatprep.subr.mxu0 0.0
    %195 = vmatpush1.msra.mxu0 0.0
    %196 = vmatprep.subr.mxu0 0.0
    %197 = vmatpush1.msra.mxu0 0.0
    %198 = vmatprep.subr.mxu0 0.0
    %199 = vmatpush1.msra.mxu0 0.0
    %200 = vmatprep.subr.mxu0 0.0
    %201 = vmatpush1.msra.mxu0 0.0
    %202 = vmatprep.subr.mxu0 0.0
    %203 = vmatpush1.msra.mxu0 0.0
    %204 = vmatprep.subr.mxu0 0.0
    %205 = vmatpush1.msra.mxu0 0.0
    %206 = vmatprep.subr.mxu0 0.0
    %207 = vmatpush1.msra.mxu0 0.0
    %208 = vmatprep.subr.mxu0 0.0
    %209 = vmatpush1.msra.mxu0 0.0
    %210 = vmatprep.subr.mxu0 0.0
    %211 = vmatpush1.msra.mxu0 0.0
    %212 = vmatprep.subr.mxu0 0.0
    %213 = vmatpush1.msra.mxu0 0.0
    %214 = vmatprep.subr.mxu0 0.0
    %215 = vmatpush1.msra.mxu0 0.0
    %216 = vmatprep.subr.mxu0 0.0
    %217 = vmatpush1.msra.mxu0 0.0
    %218 = vmatprep.subr.mxu0 0.0
    %219 = vmatpush1.msra.mxu0 0.0
    %220 = vmatprep.subr.mxu0 0.0
    %221 = vmatpush1.msra.mxu0 0.0
    %222 = vmatprep.subr.mxu0 0.0
    %223 = vmatpush1.msra.mxu0 0.0
    %224 = vmatprep.subr.mxu0 0.0
    %225 = vmatpush1.msra.mxu0 0.0
    %226 = vmatprep.mubr.f32.mxu0 0.0
    %227 = vmatmul.mubr.f32.gmra.mrb[0].mxu0 %v138
    %v228 = vpop.f32.mrb[0].mxu0
    %v229 = vadd.f32 %v160, %v228
    %v230 = vpop.f32.mrb[0].mxu0
    %231 = vdwg.mxu0
    %v232 = vmax.f32 %v229, 0.0
    %v233 = vld [vmem:[#allocation7] sm:$0xff]
    %v234 = vld [vmem:[#allocation7 + $0x8] sm:$0xff]
    %v235 = vld [vmem:[#allocation7 + $0x10] sm:$0xff]
    %v236 = vld [vmem:[#allocation7 + $0x18] sm:$0xff]
    %v237 = vld [vmem:[#allocation7 + $0x20] sm:$0xff]
    %v238 = vld [vmem:[#allocation7 + $0x28] sm:$0xff]
    %v239 = vld [vmem:[#allocation7 + $0x30] sm:$0xff]
    %v240 = vld [vmem:[#allocation7 + $0x38] sm:$0xff]
    %v241 = vld [vmem:[#allocation7 + $0x40] sm:$0xff]
    %v242 = vld [vmem:[#allocation7 + $0x48] sm:$0xff]
    %v243 = vld [vmem:[#allocation7 + $0x50] sm:$0xff]
    %v244 = vld [vmem:[#allocation7 + $0x58] sm:$0xff]
    %v245 = vld [vmem:[#allocation7 + $0x60] sm:$0xff]
    %v246 = vld [vmem:[#allocation7 + $0x68] sm:$0xff]
    %v247 = vld [vmem:[#allocation7 + $0x70] sm:$0xff]
    %v248 = vld [vmem:[#allocation7 + $0x78] sm:$0xff]
    %v249 = vld [vmem:[%s4] sm:$0x1]
    %v251 = vlaneseq
    %v252 = vshrl.u32 %v251, 7
    %v253 = vsub.s32 0, %v252
    %v254 = vrot.slane %v249, %v253
    %256 = vmatprep.subr.mxu0 0.0
    %257 = vmatpush1.msra.mxu0 %v233
    %258 = vmatprep.subr.mxu0 0.0
    %259 = vmatpush1.msra.mxu0 %v234
    %260 = vmatprep.subr.mxu0 0.0
    %261 = vmatpush1.msra.mxu0 %v235
    %262 = vmatprep.subr.mxu0 0.0
    %263 = vmatpush1.msra.mxu0 %v236
    %264 = vmatprep.subr.mxu0 0.0
    %265 = vmatpush1.msra.mxu0 %v237
    %266 = vmatprep.subr.mxu0 0.0
    %267 = vmatpush1.msra.mxu0 %v238
    %268 = vmatprep.subr.mxu0 0.0
    %269 = vmatpush1.msra.mxu0 %v239
    %270 = vmatprep.subr.mxu0 0.0
    %271 = vmatpush1.msra.mxu0 %v240
    %272 = vmatprep.subr.mxu0 0.0
    %273 = vmatpush1.msra.mxu0 %v241
    %274 = vmatprep.subr.mxu0 0.0
    %275 = vmatpush1.msra.mxu0 %v242
    %276 = vmatprep.subr.mxu0 0.0
    %277 = vmatpush1.msra.mxu0 %v243
    %278 = vmatprep.subr.mxu0 0.0
    %279 = vmatpush1.msra.mxu0 %v244
    %280 = vmatprep.subr.mxu0 0.0
    %281 = vmatpush1.msra.mxu0 %v245
    %282 = vmatprep.subr.mxu0 0.0
    %283 = vmatpush1.msra.mxu0 %v246
    %284 = vmatprep.subr.mxu0 0.0
    %285 = vmatpush1.msra.mxu0 %v247
    %286 = vmatprep.subr.mxu0 0.0
    %287 = vmatpush1.msra.mxu0 %v248
    %288 = vmatprep.subr.mxu0 0.0
    %289 = vmatpush1.msra.mxu0 0.0
    %290 = vmatprep.subr.mxu0 0.0
    %291 = vmatpush1.msra.mxu0 0.0
    %292 = vmatprep.subr.mxu0 0.0
    %293 = vmatpush1.msra.mxu0 0.0
    %294 = vmatprep.subr.mxu0 0.0
    %295 = vmatpush1.msra.mxu0 0.0
    %296 = vmatprep.subr.mxu0 0.0
    %297 = vmatpush1.msra.mxu0 0.0
    %298 = vmatprep.subr.mxu0 0.0
    %299 = vmatpush1.msra.mxu0 0.0
    %300 = vmatprep.subr.mxu0 0.0
    %301 = vmatpush1.msra.mxu0 0.0
    %302 = vmatprep.subr.mxu0 0.0
    %303 = vmatpush1.msra.mxu0 0.0
    %304 = vmatprep.subr.mxu0 0.0
    %305 = vmatpush1.msra.mxu0 0.0
    %306 = vmatprep.subr.mxu0 0.0
    %307 = vmatpush1.msra.mxu0 0.0
    %308 = vmatprep.subr.mxu0 0.0
    %309 = vmatpush1.msra.mxu0 0.0
    %310 = vmatprep.subr.mxu0 0.0
    %311 = vmatpush1.msra.mxu0 0.0
    %312 = vmatprep.subr.mxu0 0.0
    %313 = vmatpush1.msra.mxu0 0.0
    %314 = vmatprep.subr.mxu0 0.0
    %315 = vmatpush1.msra.mxu0 0.0
    %316 = vmatprep.subr.mxu0 0.0
    %317 = vmatpush1.msra.mxu0 0.0
    %318 = vmatprep.subr.mxu0 0.0
    %319 = vmatpush1.msra.mxu0 0.0
    %320 = vmatprep.mubr.f32.mxu0 0.0
    %321 = vmatmul.mubr.f32.gmra.mrb[0].mxu0 %v232
    %v322 = vpop.f32.mrb[0].mxu0
    %v323 = vadd.f32 %v254, %v322
    %v324 = vpop.f32.mrb[0].mxu0
    %325 = vdwg.mxu0
    %v326 = vmax.f32 %v323, 0.0
    %v327 = vld [vmem:[#allocation8] sm:$0xff]
    %v328 = vld [vmem:[#allocation8 + $0x8] sm:$0xff]
    %v329 = vld [vmem:[#allocation8 + $0x10] sm:$0xff]
    %v330 = vld [vmem:[#allocation8 + $0x18] sm:$0xff]
    %v331 = vld [vmem:[#allocation8 + $0x20] sm:$0xff]
    %v332 = vld [vmem:[#allocation8 + $0x28] sm:$0xff]
    %v333 = vld [vmem:[#allocation8 + $0x30] sm:$0xff]
    %v334 = vld [vmem:[#allocation8 + $0x38] sm:$0xff]
    %v335 = vld [vmem:[#allocation8 + $0x40] sm:$0xff]
    %v336 = vld [vmem:[#allocation8 + $0x48] sm:$0xff]
    %v337 = vld [vmem:[#allocation8 + $0x50] sm:$0xff]
    %v338 = vld [vmem:[#allocation8 + $0x58] sm:$0xff]
    %v339 = vld [vmem:[#allocation8 + $0x60] sm:$0xff]
    %v340 = vld [vmem:[#allocation8 + $0x68] sm:$0xff]
    %v341 = vld [vmem:[#allocation8 + $0x70] sm:$0xff]
    %v342 = vld [vmem:[#allocation8 + $0x78] sm:$0xff]
    %v343 = vld [vmem:[%s6] sm:$0x1]
    %v345 = vlaneseq
    %v346 = vshrl.u32 %v345, 7
    %v347 = vsub.s32 0, %v346
    %v348 = vrot.slane %v343, %v347
    %350 = vmatprep.subr.mxu0 0.0
    %351 = vmatpush1.msra.mxu0 %v327
    %352 = vmatprep.subr.mxu0 0.0
    %353 = vmatpush1.msra.mxu0 %v328
    %354 = vmatprep.subr.mxu0 0.0
    %355 = vmatpush1.msra.mxu0 %v329
    %356 = vmatprep.subr.mxu0 0.0
    %357 = vmatpush1.msra.mxu0 %v330
    %358 = vmatprep.subr.mxu0 0.0
    %359 = vmatpush1.msra.mxu0 %v331
    %360 = vmatprep.subr.mxu0 0.0
    %361 = vmatpush1.msra.mxu0 %v332
    %362 = vmatprep.subr.mxu0 0.0
    %363 = vmatpush1.msra.mxu0 %v333
    %364 = vmatprep.subr.mxu0 0.0
    %365 = vmatpush1.msra.mxu0 %v334
    %366 = vmatprep.subr.mxu0 0.0
    %367 = vmatpush1.msra.mxu0 %v335
    %368 = vmatprep.subr.mxu0 0.0
    %369 = vmatpush1.msra.mxu0 %v336
    %370 = vmatprep.subr.mxu0 0.0
    %371 = vmatpush1.msra.mxu0 %v337
    %372 = vmatprep.subr.mxu0 0.0
    %373 = vmatpush1.msra.mxu0 %v338
    %374 = vmatprep.subr.mxu0 0.0
    %375 = vmatpush1.msra.mxu0 %v339
    %376 = vmatprep.subr.mxu0 0.0
    %377 = vmatpush1.msra.mxu0 %v340
    %378 = vmatprep.subr.mxu0 0.0
    %379 = vmatpush1.msra.mxu0 %v341
    %380 = vmatprep.subr.mxu0 0.0
    %381 = vmatpush1.msra.mxu0 %v342
    %382 = vmatprep.subr.mxu0 0.0
    %383 = vmatpush1.msra.mxu0 0.0
    %384 = vmatprep.subr.mxu0 0.0
    %385 = vmatpush1.msra.mxu0 0.0
    %386 = vmatprep.subr.mxu0 0.0
    %387 = vmatpush1.msra.mxu0 0.0
    %388 = vmatprep.subr.mxu0 0.0
    %389 = vmatpush1.msra.mxu0 0.0
    %390 = vmatprep.subr.mxu0 0.0
    %391 = vmatpush1.msra.mxu0 0.0
    %392 = vmatprep.subr.mxu0 0.0
    %393 = vmatpush1.msra.mxu0 0.0
    %394 = vmatprep.subr.mxu0 0.0
    %395 = vmatpush1.msra.mxu0 0.0
    %396 = vmatprep.subr.mxu0 0.0
    %397 = vmatpush1.msra.mxu0 0.0
    %398 = vmatprep.subr.mxu0 0.0
    %399 = vmatpush1.msra.mxu0 0.0
    %400 = vmatprep.subr.mxu0 0.0
    %401 = vmatpush1.msra.mxu0 0.0
    %402 = vmatprep.subr.mxu0 0.0
    %403 = vmatpush1.msra.mxu0 0.0
    %404 = vmatprep.subr.mxu0 0.0
    %405 = vmatpush1.msra.mxu0 0.0
    %406 = vmatprep.subr.mxu0 0.0
    %407 = vmatpush1.msra.mxu0 0.0
    %408 = vmatprep.subr.mxu0 0.0
    %409 = vmatpush1.msra.mxu0 0.0
    %410 = vmatprep.subr.mxu0 0.0
    %411 = vmatpush1.msra.mxu0 0.0
    %412 = vmatprep.subr.mxu0 0.0
    %413 = vmatpush1.msra.mxu0 0.0
    %414 = vmatprep.mubr.f32.mxu0 0.0
    %415 = vmatmul.mubr.f32.gmra.mrb[0].mxu0 %v326
    %v416 = vpop.f32.mrb[0].mxu0
    %v417 = vadd.f32 %v348, %v416
    %v418 = vpop.f32.mrb[0].mxu0
    %419 = vdwg.mxu0
    %v420 = vmax.f32 %v417, 0.0
    %v421 = vld [vmem:[#allocation10] sm:$0xff]
    %v422 = vld [vmem:[#allocation10 + $0x8] sm:$0xff]
    %v423 = vld [vmem:[#allocation10 + $0x10] sm:$0xff]
    %v424 = vld [vmem:[#allocation10 + $0x18] sm:$0xff]
    %v425 = vld [vmem:[#allocation10 + $0x20] sm:$0xff]
    %v426 = vld [vmem:[#allocation10 + $0x28] sm:$0xff]
    %v427 = vld [vmem:[#allocation10 + $0x30] sm:$0xff]
    %v428 = vld [vmem:[#allocation10 + $0x38] sm:$0xff]
    %v429 = vld [vmem:[#allocation10 + $0x40] sm:$0xff]
    %v430 = vld [vmem:[#allocation10 + $0x48] sm:$0xff]
    %v431 = vld [vmem:[#allocation10 + $0x50] sm:$0xff]
    %v432 = vld [vmem:[#allocation10 + $0x58] sm:$0xff]
    %v433 = vld [vmem:[#allocation10 + $0x60] sm:$0xff]
    %v434 = vld [vmem:[#allocation10 + $0x68] sm:$0xff]
    %v435 = vld [vmem:[#allocation10 + $0x70] sm:$0xff]
    %v436 = vld [vmem:[#allocation10 + $0x78] sm:$0xff]
    %v437 = vld [vmem:[%s8] sm:$0x1]
    %v439 = vlaneseq
    %v440 = vshrl.u32 %v439, 7
    %v441 = vsub.s32 0, %v440
    %v442 = vrot.slane %v437, %v441
    %444 = vmatprep.subr.mxu0 0.0
    %445 = vmatpush1.msra.mxu0 %v421
    %446 = vmatprep.subr.mxu0 0.0
    %447 = vmatpush1.msra.mxu0 %v422
    %448 = vmatprep.subr.mxu0 0.0
    %449 = vmatpush1.msra.mxu0 %v423
    %450 = vmatprep.subr.mxu0 0.0
    %451 = vmatpush1.msra.mxu0 %v424
    %452 = vmatprep.subr.mxu0 0.0
    %453 = vmatpush1.msra.mxu0 %v425
    %454 = vmatprep.subr.mxu0 0.0
    %455 = vmatpush1.msra.mxu0 %v426
    %456 = vmatprep.subr.mxu0 0.0
    %457 = vmatpush1.msra.mxu0 %v427
    %458 = vmatprep.subr.mxu0 0.0
    %459 = vmatpush1.msra.mxu0 %v428
    %460 = vmatprep.subr.mxu0 0.0
    %461 = vmatpush1.msra.mxu0 %v429
    %462 = vmatprep.subr.mxu0 0.0
    %463 = vmatpush1.msra.mxu0 %v430
    %464 = vmatprep.subr.mxu0 0.0
    %465 = vmatpush1.msra.mxu0 %v431
    %466 = vmatprep.subr.mxu0 0.0
    %467 = vmatpush1.msra.mxu0 %v432
    %468 = vmatprep.subr.mxu0 0.0
    %469 = vmatpush1.msra.mxu0 %v433
    %470 = vmatprep.subr.mxu0 0.0
    %471 = vmatpush1.msra.mxu0 %v434
    %472 = vmatprep.subr.mxu0 0.0
    %473 = vmatpush1.msra.mxu0 %v435
    %474 = vmatprep.subr.mxu0 0.0
    %475 = vmatpush1.msra.mxu0 %v436
    %476 = vmatprep.subr.mxu0 0.0
    %477 = vmatpush1.msra.mxu0 0.0
    %478 = vmatprep.subr.mxu0 0.0
    %479 = vmatpush1.msra.mxu0 0.0
    %480 = vmatprep.subr.mxu0 0.0
    %481 = vmatpush1.msra.mxu0 0.0
    %482 = vmatprep.subr.mxu0 0.0
    %483 = vmatpush1.msra.mxu0 0.0
    %484 = vmatprep.subr.mxu0 0.0
    %485 = vmatpush1.msra.mxu0 0.0
    %486 = vmatprep.subr.mxu0 0.0
    %487 = vmatpush1.msra.mxu0 0.0
    %488 = vmatprep.subr.mxu0 0.0
    %489 = vmatpush1.msra.mxu0 0.0
    %490 = vmatprep.subr.mxu0 0.0
    %491 = vmatpush1.msra.mxu0 0.0
    %492 = vmatprep.subr.mxu0 0.0
    %493 = vmatpush1.msra.mxu0 0.0
    %494 = vmatprep.subr.mxu0 0.0
    %495 = vmatpush1.msra.mxu0 0.0
    %496 = vmatprep.subr.mxu0 0.0
    %497 = vmatpush1.msra.mxu0 0.0
    %498 = vmatprep.subr.mxu0 0.0
    %499 = vmatpush1.msra.mxu0 0.0
    %500 = vmatprep.subr.mxu0 0.0
    %501 = vmatpush1.msra.mxu0 0.0
    %502 = vmatprep.subr.mxu0 0.0
    %503 = vmatpush1.msra.mxu0 0.0
    %504 = vmatprep.subr.mxu0 0.0
    %505 = vmatpush1.msra.mxu0 0.0
    %506 = vmatprep.subr.mxu0 0.0
    %507 = vmatpush1.msra.mxu0 0.0
    %508 = vmatprep.mubr.f32.mxu0 0.0
    %509 = vmatmul.mubr.f32.gmra.mrb[0].mxu0 %v420
    %v510 = vpop.f32.mrb[0].mxu0
    %v511 = vadd.f32 %v442, %v510
    %v512 = vpop.f32.mrb[0].mxu0
    %513 = vdwg.mxu0
    %v514 = vmax.f32 %v511, 0.0
    %v515 = vld [vmem:[#allocation11] sm:$0xff]
    %v516 = vld [vmem:[#allocation11 + $0x8] sm:$0xff]
    %v517 = vld [vmem:[#allocation11 + $0x10] sm:$0xff]
    %v518 = vld [vmem:[#allocation11 + $0x18] sm:$0xff]
    %v519 = vld [vmem:[#allocation11 + $0x20] sm:$0xff]
    %v520 = vld [vmem:[#allocation11 + $0x28] sm:$0xff]
    %v521 = vld [vmem:[#allocation11 + $0x30] sm:$0xff]
    %v522 = vld [vmem:[#allocation11 + $0x38] sm:$0xff]
    %v523 = vld [vmem:[#allocation11 + $0x40] sm:$0xff]
    %v524 = vld [vmem:[#allocation11 + $0x48] sm:$0xff]
    %v525 = vld [vmem:[#allocation11 + $0x50] sm:$0xff]
    %v526 = vld [vmem:[#allocation11 + $0x58] sm:$0xff]
    %v527 = vld [vmem:[#allocation11 + $0x60] sm:$0xff]
    %v528 = vld [vmem:[#allocation11 + $0x68] sm:$0xff]
    %v529 = vld [vmem:[#allocation11 + $0x70] sm:$0xff]
    %v530 = vld [vmem:[#allocation11 + $0x78] sm:$0xff]
    %v531 = vld [vmem:[%s10] sm:$0x1]
    %v533 = vlaneseq
    %v534 = vshrl.u32 %v533, 7
    %v535 = vsub.s32 0, %v534
    %v536 = vrot.slane %v531, %v535
    %538 = vmatprep.subr.mxu0 0.0
    %539 = vmatpush1.msra.mxu0 %v515
    %540 = vmatprep.subr.mxu0 0.0
    %541 = vmatpush1.msra.mxu0 %v516
    %542 = vmatprep.subr.mxu0 0.0
    %543 = vmatpush1.msra.mxu0 %v517
    %544 = vmatprep.subr.mxu0 0.0
    %545 = vmatpush1.msra.mxu0 %v518
    %546 = vmatprep.subr.mxu0 0.0
    %547 = vmatpush1.msra.mxu0 %v519
    %548 = vmatprep.subr.mxu0 0.0
    %549 = vmatpush1.msra.mxu0 %v520
    %550 = vmatprep.subr.mxu0 0.0
    %551 = vmatpush1.msra.mxu0 %v521
    %552 = vmatprep.subr.mxu0 0.0
    %553 = vmatpush1.msra.mxu0 %v522
    %554 = vmatprep.subr.mxu0 0.0
    %555 = vmatpush1.msra.mxu0 %v523
    %556 = vmatprep.subr.mxu0 0.0
    %557 = vmatpush1.msra.mxu0 %v524
    %558 = vmatprep.subr.mxu0 0.0
    %559 = vmatpush1.msra.mxu0 %v525
    %560 = vmatprep.subr.mxu0 0.0
    %561 = vmatpush1.msra.mxu0 %v526
    %562 = vmatprep.subr.mxu0 0.0
    %563 = vmatpush1.msra.mxu0 %v527
    %564 = vmatprep.subr.mxu0 0.0
    %565 = vmatpush1.msra.mxu0 %v528
    %566 = vmatprep.subr.mxu0 0.0
    %567 = vmatpush1.msra.mxu0 %v529
    %568 = vmatprep.subr.mxu0 0.0
    %569 = vmatpush1.msra.mxu0 %v530
    %570 = vmatprep.subr.mxu0 0.0
    %571 = vmatpush1.msra.mxu0 0.0
    %572 = vmatprep.subr.mxu0 0.0
    %573 = vmatpush1.msra.mxu0 0.0
    %574 = vmatprep.subr.mxu0 0.0
    %575 = vmatpush1.msra.mxu0 0.0
    %576 = vmatprep.subr.mxu0 0.0
    %577 = vmatpush1.msra.mxu0 0.0
    %578 = vmatprep.subr.mxu0 0.0
    %579 = vmatpush1.msra.mxu0 0.0
    %580 = vmatprep.subr.mxu0 0.0
    %581 = vmatpush1.msra.mxu0 0.0
    %582 = vmatprep.subr.mxu0 0.0
    %583 = vmatpush1.msra.mxu0 0.0
    %584 = vmatprep.subr.mxu0 0.0
    %585 = vmatpush1.msra.mxu0 0.0
    %586 = vmatprep.subr.mxu0 0.0
    %587 = vmatpush1.msra.mxu0 0.0
    %588 = vmatprep.subr.mxu0 0.0
    %589 = vmatpush1.msra.mxu0 0.0
    %590 = vmatprep.subr.mxu0 0.0
    %591 = vmatpush1.msra.mxu0 0.0
    %592 = vmatprep.subr.mxu0 0.0
    %593 = vmatpush1.msra.mxu0 0.0
    %594 = vmatprep.subr.mxu0 0.0
    %595 = vmatpush1.msra.mxu0 0.0
    %596 = vmatprep.subr.mxu0 0.0
    %597 = vmatpush1.msra.mxu0 0.0
    %598 = vmatprep.subr.mxu0 0.0
    %599 = vmatpush1.msra.mxu0 0.0
    %600 = vmatprep.subr.mxu0 0.0
    %601 = vmatpush1.msra.mxu0 0.0
    %602 = vmatprep.mubr.f32.mxu0 0.0
    %603 = vmatmul.mubr.f32.gmra.mrb[0].mxu0 %v514
    %v604 = vpop.f32.mrb[0].mxu0
    %v605 = vadd.f32 %v536, %v604
    %v606 = vpop.f32.mrb[0].mxu0
    %607 = vdwg.mxu0
    %v608 = vmax.f32 %v605, 0.0
    %v609 = vld [vmem:[#allocation13] sm:$0xff]
    %v610 = vld [vmem:[#allocation13 + $0x8] sm:$0xff]
    %v611 = vld [vmem:[#allocation13 + $0x10] sm:$0xff]
    %v612 = vld [vmem:[#allocation13 + $0x18] sm:$0xff]
    %v613 = vld [vmem:[#allocation13 + $0x20] sm:$0xff]
    %v614 = vld [vmem:[#allocation13 + $0x28] sm:$0xff]
    %v615 = vld [vmem:[#allocation13 + $0x30] sm:$0xff]
    %v616 = vld [vmem:[#allocation13 + $0x38] sm:$0xff]
    %v617 = vld [vmem:[#allocation13 + $0x40] sm:$0xff]
    %v618 = vld [vmem:[#allocation13 + $0x48] sm:$0xff]
    %v619 = vld [vmem:[#allocation13 + $0x50] sm:$0xff]
    %v620 = vld [vmem:[#allocation13 + $0x58] sm:$0xff]
    %v621 = vld [vmem:[#allocation13 + $0x60] sm:$0xff]
    %v622 = vld [vmem:[#allocation13 + $0x68] sm:$0xff]
    %v623 = vld [vmem:[#allocation13 + $0x70] sm:$0xff]
    %v624 = vld [vmem:[#allocation13 + $0x78] sm:$0xff]
    %v625 = vld [vmem:[%s12] sm:$0x1]
    %v627 = vlaneseq
    %v628 = vshrl.u32 %v627, 7
    %v629 = vsub.s32 0, %v628
    %v630 = vrot.slane %v625, %v629
    %632 = vmatprep.subr.mxu0 0.0
    %633 = vmatpush1.msra.mxu0 %v609
    %634 = vmatprep.subr.mxu0 0.0
    %635 = vmatpush1.msra.mxu0 %v610
    %636 = vmatprep.subr.mxu0 0.0
    %637 = vmatpush1.msra.mxu0 %v611
    %638 = vmatprep.subr.mxu0 0.0
    %639 = vmatpush1.msra.mxu0 %v612
    %640 = vmatprep.subr.mxu0 0.0
    %641 = vmatpush1.msra.mxu0 %v613
    %642 = vmatprep.subr.mxu0 0.0
    %643 = vmatpush1.msra.mxu0 %v614
    %644 = vmatprep.subr.mxu0 0.0
    %645 = vmatpush1.msra.mxu0 %v615
    %646 = vmatprep.subr.mxu0 0.0
    %647 = vmatpush1.msra.mxu0 %v616
    %648 = vmatprep.subr.mxu0 0.0
    %649 = vmatpush1.msra.mxu0 %v617
    %650 = vmatprep.subr.mxu0 0.0
    %651 = vmatpush1.msra.mxu0 %v618
    %652 = vmatprep.subr.mxu0 0.0
    %653 = vmatpush1.msra.mxu0 %v619
    %654 = vmatprep.subr.mxu0 0.0
    %655 = vmatpush1.msra.mxu0 %v620
    %656 = vmatprep.subr.mxu0 0.0
    %657 = vmatpush1.msra.mxu0 %v621
    %658 = vmatprep.subr.mxu0 0.0
    %659 = vmatpush1.msra.mxu0 %v622
    %660 = vmatprep.subr.mxu0 0.0
    %661 = vmatpush1.msra.mxu0 %v623
    %662 = vmatprep.subr.mxu0 0.0
    %663 = vmatpush1.msra.mxu0 %v624
    %664 = vmatprep.subr.mxu0 0.0
    %665 = vmatpush1.msra.mxu0 0.0
    %666 = vmatprep.subr.mxu0 0.0
    %667 = vmatpush1.msra.mxu0 0.0
    %668 = vmatprep.subr.mxu0 0.0
    %669 = vmatpush1.msra.mxu0 0.0
    %670 = vmatprep.subr.mxu0 0.0
    %671 = vmatpush1.msra.mxu0 0.0
    %672 = vmatprep.subr.mxu0 0.0
    %673 = vmatpush1.msra.mxu0 0.0
    %674 = vmatprep.subr.mxu0 0.0
    %675 = vmatpush1.msra.mxu0 0.0
    %676 = vmatprep.subr.mxu0 0.0
    %677 = vmatpush1.msra.mxu0 0.0
    %678 = vmatprep.subr.mxu0 0.0
    %679 = vmatpush1.msra.mxu0 0.0
    %680 = vmatprep.subr.mxu0 0.0
    %681 = vmatpush1.msra.mxu0 0.0
    %682 = vmatprep.subr.mxu0 0.0
    %683 = vmatpush1.msra.mxu0 0.0
    %684 = vmatprep.subr.mxu0 0.0
    %685 = vmatpush1.msra.mxu0 0.0
    %686 = vmatprep.subr.mxu0 0.0
    %687 = vmatpush1.msra.mxu0 0.0
    %688 = vmatprep.subr.mxu0 0.0
    %689 = vmatpush1.msra.mxu0 0.0
    %690 = vmatprep.subr.mxu0 0.0
    %691 = vmatpush1.msra.mxu0 0.0
    %692 = vmatprep.subr.mxu0 0.0
    %693 = vmatpush1.msra.mxu0 0.0
    %694 = vmatprep.subr.mxu0 0.0
    %695 = vmatpush1.msra.mxu0 0.0
    %696 = vmatprep.mubr.f32.mxu0 0.0
    %697 = vmatmul.mubr.f32.gmra.mrb[0].mxu0 %v608
    %v698 = vpop.f32.mrb[0].mxu0
    %v699 = vadd.f32 %v630, %v698
    %v700 = vpop.f32.mrb[0].mxu0
    %701 = vdwg.mxu0
    %702 = vst [vmem:[#allocation14] sm:$0xff] %v699
    // Predicated region
    $region82: #{tpu_custom_call.1} parent=1 // pred_check
      _
    $region83: #{tpu_custom_call.1} parent=1 // pred_check_branch
      %704 = sbr.rel (0) target = $region85
    $region84: #{tpu_custom_call.1} parent=1 // pred_region
      %s706 = ssub.s32 128, 128
      %707 = vsyncadd [#allocation4], %s706
      %s709 = sshll.u32 [#allocation14], 4
      %s710 = int_to_ptr.vmem [resolvable:$true] %s709
      %712 = dma.vmem_to_hbm [thread:$0]  %s710, 128, %s13, [#allocation4]
    $region85: #{tpu_custom_call.1} parent=1 // pred_fallthru
      _
    // Predicated region
    $region86: #{tpu_custom_call.1} parent=1 // pred_check
      _
    $region87: #{tpu_custom_call.1} parent=1 // pred_check_branch
      %714 = sbr.rel (0) target = $region89
    $region88: #{tpu_custom_call.1} parent=1 // pred_region
      %715 = dma.done [#allocation4], 128
    $region89: #{tpu_custom_call.1} parent=1 // pred_fallthru
      _
    %716 = vsyncpa [#allocation3], 1
    %717 = vsyncpa [#allocation6], 1
    %718 = vsyncpa [#allocation9], 1
    %719 = vsyncpa [#allocation12], 1
    %720 = vsyncpa [#allocation4], 1

// kernel: tpu_custom_call.1
$region0: #{tpu_custom_call.1}
  #allocation0 [shape = 'u32[]', space=smem, size = 0x4, offset = 0x4, fixed_abs, tag = 'smem constant byte address 0x4 - core index']
  #allocation1 [shape = 'u32[144,128]{1,0:T(1,128)}', space=vmem, size = 0x12000, scoped, tag = 'internal scratch']
  %s0 = inlined_call_operand.hbm [shape: f32[8,128], index: 0, kind: input, shape index: {}]
  %s1 = inlined_call_operand.hbm [shape: f32[128,128], index: 1, kind: input, shape index: {}]
  %s2 = inlined_call_operand.vmem [shape: f32[1,128], index: 2, kind: input, shape index: {}]
  %s3 = inlined_call_operand.hbm [shape: f32[128,128], index: 3, kind: input, shape index: {}]
  %s4 = inlined_call_operand.vmem [shape: f32[1,128], index: 4, kind: input, shape index: {}]
  %s5 = inlined_call_operand.hbm [shape: f32[128,128], index: 5, kind: input, shape index: {}]
  %s6 = inlined_call_operand.vmem [shape: f32[1,128], index: 6, kind: input, shape index: {}]
  %s7 = inlined_call_operand.hbm [shape: f32[128,128], index: 7, kind: input, shape index: {}]
  %s8 = inlined_call_operand.vmem [shape: f32[1,128], index: 8, kind: input, shape index: {}]
  %s9 = inlined_call_operand.hbm [shape: f32[128,128], index: 9, kind: input, shape index: {}]
  %s10 = inlined_call_operand.vmem [shape: f32[1,128], index: 10, kind: input, shape index: {}]
  %s11 = inlined_call_operand.hbm [shape: f32[128,128], index: 11, kind: input, shape index: {}]
  %s12 = inlined_call_operand.vmem [shape: f32[1,128], index: 12, kind: input, shape index: {}]
  %s13 = inlined_call_operand.hbm [shape: f32[8,128], index: 13, kind: output, shape index: {}]
  %s14 = sld [smem:[#allocation0]]
  $region90: #{tpu_custom_call.1} parent=0
    _
  %s16 = ssub.s32 1, %s14
  %s17 = scalar_select 0, %s16, %s14
  $region1: #{tpu_custom_call.1} parent=0
    #allocation2 [shape = 'u8[4096]{0}', space=vmem, size = 0x1000, scoped, tag = 'input window, operand 0, single buffered']
    #allocation3 [shape = 's32[1]{0}', space=sflag, size = 0x4, scoped, tag = 'scoped memory for tpu_custom_call.1']
    #allocation4 [shape = 's32[1]{0}', space=sflag, size = 0x4, scoped, tag = 'scoped memory for tpu_custom_call.1']
    #allocation5 [shape = 'u8[65536]{0}', space=vmem, size = 0x10000, scoped, tag = 'input window, operand 1, single buffered']
    #allocation6 [shape = 's32[1]{0}', space=sflag, size = 0x4, scoped, tag = 'scoped memory for tpu_custom_call.1']
    #allocation7 [shape = 'u8[65536]{0}', space=vmem, size = 0x10000, scoped, tag = 'input window, operand 3, single buffered']
    #allocation8 [shape = 'u8[65536]{0}', space=vmem, size = 0x10000, scoped, tag = 'input window, operand 5, single buffered']
    #allocation9 [shape = 's32[1]{0}', space=sflag, size = 0x4, scoped, tag = 'scoped memory for tpu_custom_call.1']
    #allocation10 [shape = 'u8[65536]{0}', space=vmem, size = 0x10000, scoped, tag = 'input window, operand 7, single buffered']
    #allocation11 [shape = 'u8[65536]{0}', space=vmem, size = 0x10000, scoped, tag = 'input window, operand 9, single buffered']
    #allocation12 [shape = 's32[1]{0}', space=sflag, size = 0x4, scoped, tag = 'scoped memory for tpu_custom_call.1']
    #allocation13 [shape = 'u8[65536]{0}', space=vmem, size = 0x10000, scoped, tag = 'input window, operand 11, single buffered']
    #allocation14 [shape = 'u8[4096]{0}', space=vmem, size = 0x1000, scoped, tag = 'output window, operand 0, single buffered']
    %18 = vsyncpa [#allocation3], 0
    %19 = vsyncpa [#allocation6], 0
    %20 = vsyncpa [#allocation9], 0
    %21 = vsyncpa [#allocation12], 0
    %22 = vsyncpa [#allocation4], 0
    // Predicated region
    $region2: #{tpu_custom_call.1} parent=1 // pred_check
      _
    $region3: #{tpu_custom_call.1} parent=1 // pred_check_branch
      %24 = sbr.rel (0) target = $region5
    $region4: #{tpu_custom_call.1} parent=1 // pred_region
      %s26 = ssub.s32 128, 128
      %27 = vsyncadd [#allocation3], %s26
      %s29 = sshll.u32 [#allocation2], 4
      %s30 = int_to_ptr.vmem [resolvable:$true] %s29
      %32 = dma.hbm_to_vmem [thread:$0]  %s0, 128, %s30, [#allocation3]
    $region5: #{tpu_custom_call.1} parent=1 // pred_fallthru
      _
    // Predicated region
    $region6: #{tpu_custom_call.1} parent=1 // pred_check
      _
    $region7: #{tpu_custom_call.1} parent=1 // pred_check_branch
      %34 = sbr.rel (0) target = $region9
    $region8: #{tpu_custom_call.1} parent=1 // pred_region
      %s36 = ssub.s32 2048, 2048
      %37 = vsyncadd [#allocation6], %s36
      %s38 = sshll.u32 [#allocation5], 4
      %s39 = int_to_ptr.vmem [resolvable:$true] %s38
      %44 = dma.hbm_to_vmem [thread:$0]  %s1, 2048, %s39, [#allocation6], 128, 128, 8
    $region9: #{tpu_custom_call.1} parent=1 // pred_fallthru
      _
    // Predicated region
    $region10: #{tpu_custom_call.1} parent=1 // pred_check
      _
    $region11: #{tpu_custom_call.1} parent=1 // pred_check_branch
      %46 = sbr.rel (0) target = $region13
    $region12: #{tpu_custom_call.1} parent=1 // pred_region
      _
    $region13: #{tpu_custom_call.1} parent=1 // pred_fallthru
      _
    // Predicated region
    $region14: #{tpu_custom_call.1} parent=1 // pred_check
      _
    $region15: #{tpu_custom_call.1} parent=1 // pred_check_branch
      %48 = sbr.rel (0) target = $region17
    $region16: #{tpu_custom_call.1} parent=1 // pred_region
      %s50 = ssub.s32 2048, 2048
      %51 = vsyncadd [#allocation6], %s50
      %s52 = sshll.u32 [#allocation7], 4
      %s53 = int_to_ptr.vmem [resolvable:$true] %s52
      %58 = dma.hbm_to_vmem [thread:$0]  %s3, 2048, %s53, [#allocation6], 128, 128, 8
    $region17: #{tpu_custom_call.1} parent=1 // pred_fallthru
      _
    // Predicated region
    $region18: #{tpu_custom_call.1} parent=1 // pred_check
      _
    $region19: #{tpu_custom_call.1} parent=1 // pred_check_branch
      %60 = sbr.rel (0) target = $region21
    $region20: #{tpu_custom_call.1} parent=1 // pred_region
      _
    $region21: #{tpu_custom_call.1} parent=1 // pred_fallthru
      _
    // Predicated region
    $region22: #{tpu_custom_call.1} parent=1 // pred_check
      _
    $region23: #{tpu_custom_call.1} parent=1 // pred_check_branch
      %62 = sbr.rel (0) target = $region25
    $region24: #{tpu_custom_call.1} parent=1 // pred_region
      %s64 = ssub.s32 2048, 2048
      %65 = vsyncadd [#allocation9], %s64
      %s66 = sshll.u32 [#allocation8], 4
      %s67 = int_to_ptr.vmem [resolvable:$true] %s66
      %72 = dma.hbm_to_vmem [thread:$0]  %s5, 2048, %s67, [#allocation9], 128, 128, 8
    $region25: #{tpu_custom_call.1} parent=1 // pred_fallthru
      _
    // Predicated region
    $region26: #{tpu_custom_call.1} parent=1 // pred_check
      _
    $region27: #{tpu_custom_call.1} parent=1 // pred_check_branch
      %74 = sbr.rel (0) target = $region29
    $region28: #{tpu_custom_call.1} parent=1 // pred_region
      _
    $region29: #{tpu_custom_call.1} parent=1 // pred_fallthru
      _
    // Predicated region
    $region30: #{tpu_custom_call.1} parent=1 // pred_check
      _
    $region31: #{tpu_custom_call.1} parent=1 // pred_check_branch
      %76 = sbr.rel (0) target = $region33
    $region32: #{tpu_custom_call.1} parent=1 // pred_region
      %s78 = ssub.s32 2048, 2048
      %79 = vsyncadd [#allocation9], %s78
      %s80 = sshll.u32 [#allocation10], 4
      %s81 = int_to_ptr.vmem [resolvable:$true] %s80
      %86 = dma.hbm_to_vmem [thread:$0]  %s7, 2048, %s81, [#allocation9], 128, 128, 8
    $region33: #{tpu_custom_call.1} parent=1 // pred_fallthru
      _
    // Predicated region
    $region34: #{tpu_custom_call.1} parent=1 // pred_check
      _
    $region35: #{tpu_custom_call.1} parent=1 // pred_check_branch
      %88 = sbr.rel (0) target = $region37
    $region36: #{tpu_custom_call.1} parent=1 // pred_region
      _
    $region37: #{tpu_custom_call.1} parent=1 // pred_fallthru
      _
    // Predicated region
    $region38: #{tpu_custom_call.1} parent=1 // pred_check
      _
    $region39: #{tpu_custom_call.1} parent=1 // pred_check_branch
      %90 = sbr.rel (0) target = $region41
    $region40: #{tpu_custom_call.1} parent=1 // pred_region
      %s92 = ssub.s32 2048, 2048
      %93 = vsyncadd [#allocation12], %s92
      %s94 = sshll.u32 [#allocation11], 4
      %s95 = int_to_ptr.vmem [resolvable:$true] %s94
      %100 = dma.hbm_to_vmem [thread:$0]  %s9, 2048, %s95, [#allocation12], 128, 128, 8
    $region41: #{tpu_custom_call.1} parent=1 // pred_fallthru
      _
    // Predicated region
    $region42: #{tpu_custom_call.1} parent=1 // pred_check
      _
    $region43: #{tpu_custom_call.1} parent=1 // pred_check_branch
      %102 = sbr.rel (0) target = $region45
    $region44: #{tpu_custom_call.1} parent=1 // pred_region
      _
    $region45: #{tpu_custom_call.1} parent=1 // pred_fallthru
      _
    // Predicated region
    $region46: #{tpu_custom_call.1} parent=1 // pred_check
      _
    $region47: #{tpu_custom_call.1} parent=1 // pred_check_branch
      %104 = sbr.rel (0) target = $region49
    $region48: #{tpu_custom_call.1} parent=1 // pred_region
      %s106 = ssub.s32 2048, 2048
      %107 = vsyncadd [#allocation12], %s106
      %s108 = sshll.u32 [#allocation13], 4
      %s109 = int_to_ptr.vmem [resolvable:$true] %s108
      %114 = dma.hbm_to_vmem [thread:$0]  %s11, 2048, %s109, [#allocation12], 128, 128, 8
    $region49: #{tpu_custom_call.1} parent=1 // pred_fallthru
      _
    // Predicated region
    $region50: #{tpu_custom_call.1} parent=1 // pred_check
      _
    $region51: #{tpu_custom_call.1} parent=1 // pred_check_branch
      %116 = sbr.rel (0) target = $region53
    $region52: #{tpu_custom_call.1} parent=1 // pred_region
      _
    $region53: #{tpu_custom_call.1} parent=1 // pred_fallthru
      _
    // Predicated region
    $region54: #{tpu_custom_call.1} parent=1 // pred_check
      _
    $region55: #{tpu_custom_call.1} parent=1 // pred_check_branch
      %118 = sbr.rel (0) target = $region57
    $region56: #{tpu_custom_call.1} parent=1 // pred_region
      %119 = dma.done [#allocation3], 128
    $region57: #{tpu_custom_call.1} parent=1 // pred_fallthru
      _
    // Predicated region
    $region58: #{tpu_custom_call.1} parent=1 // pred_check
      _
    $region59: #{tpu_custom_call.1} parent=1 // pred_check_branch
      %121 = sbr.rel (0) target = $region61
    $region60: #{tpu_custom_call.1} parent=1 // pred_region
      %122 = dma.done [#allocation6], 2048
    $region61: #{tpu_custom_call.1} parent=1 // pred_fallthru
      _
    // Predicated region
    $region62: #{tpu_custom_call.1} parent=1 // pred_check
      _
    $region63: #{tpu_custom_call.1} parent=1 // pred_check_branch
      %124 = sbr.rel (0) target = $region65
    $region64: #{tpu_custom_call.1} parent=1 // pred_region
      %125 = dma.done [#allocation6], 2048
    $region65: #{tpu_custom_call.1} parent=1 // pred_fallthru
      _
    // Predicated region
    $region66: #{tpu_custom_call.1} parent=1 // pred_check
      _
    $region67: #{tpu_custom_call.1} parent=1 // pred_check_branch
      %127 = sbr.rel (0) target = $region69
    $region68: #{tpu_custom_call.1} parent=1 // pred_region
      %128 = dma.done [#allocation9], 2048
    $region69: #{tpu_custom_call.1} parent=1 // pred_fallthru
      _
    // Predicated region
    $region70: #{tpu_custom_call.1} parent=1 // pred_check
      _
    $region71: #{tpu_custom_call.1} parent=1 // pred_check_branch
      %130 = sbr.rel (0) target = $region73
    $region72: #{tpu_custom_call.1} parent=1 // pred_region
      %131 = dma.done [#allocation9], 2048
    $region73: #{tpu_custom_call.1} parent=1 // pred_fallthru
      _
    // Predicated region
    $region74: #{tpu_custom_call.1} parent=1 // pred_check
      _
    $region75: #{tpu_custom_call.1} parent=1 // pred_check_branch
      %133 = sbr.rel (0) target = $region77
    $region76: #{tpu_custom_call.1} parent=1 // pred_region
      %134 = dma.done [#allocation12], 2048
    $region77: #{tpu_custom_call.1} parent=1 // pred_fallthru
      _
    // Predicated region
    $region78: #{tpu_custom_call.1} parent=1 // pred_check
      _
    $region79: #{tpu_custom_call.1} parent=1 // pred_check_branch
      %136 = sbr.rel (0) target = $region81
    $region80: #{tpu_custom_call.1} parent=1 // pred_region
      %137 = dma.done [#allocation12], 2048
    $region81: #{tpu_custom_call.1} parent=1 // pred_fallthru
      _
    %v138 = vld [vmem:[#allocation2] sm:$0xff]
    %v139 = vld [vmem:[#allocation5] sm:$0xff]
    %v140 = vld [vmem:[#allocation5 + $0x8] sm:$0xff]
    %v141 = vld [vmem:[#allocation5 + $0x10] sm:$0xff]
    %v142 = vld [vmem:[#allocation5 + $0x18] sm:$0xff]
    %v143 = vld [vmem:[#allocation5 + $0x20] sm:$0xff]
    %v144 = vld [vmem:[#allocation5 + $0x28] sm:$0xff]
    %v145 = vld [vmem:[#allocation5 + $0x30] sm:$0xff]
    %v146 = vld [vmem:[#allocation5 + $0x38] sm:$0xff]
    %v147 = vld [vmem:[#allocation5 + $0x40] sm:$0xff]
    %v148 = vld [vmem:[#allocation5 + $0x48] sm:$0xff]
    %v149 = vld [vmem:[#allocation5 + $0x50] sm:$0xff]
    %v150 = vld [vmem:[#allocation5 + $0x58] sm:$0xff]
    %v151 = vld [vmem:[#allocation5 + $0x60] sm:$0xff]
    %v152 = vld [vmem:[#allocation5 + $0x68] sm:$0xff]
    %v153 = vld [vmem:[#allocation5 + $0x70] sm:$0xff]
    %v154 = vld [vmem:[#allocation5 + $0x78] sm:$0xff]
    %v155 = vld [vmem:[%s2] sm:$0x1]
    %v157 = vlaneseq
    %v158 = vshrl.u32 %v157, 7
    %v159 = vsub.s32 0, %v158
    %v160 = vrot.slane %v155, %v159
    %162 = vmatprep.subr.mxu0 0.0
    %163 = vmatpush1.msra.mxu0 %v139
    %164 = vmatprep.subr.mxu0 0.0
    %165 = vmatpush1.msra.mxu0 %v140
    %166 = vmatprep.subr.mxu0 0.0
    %167 = vmatpush1.msra.mxu0 %v141
    %168 = vmatprep.subr.mxu0 0.0
    %169 = vmatpush1.msra.mxu0 %v142
    %170 = vmatprep.subr.mxu0 0.0
    %171 = vmatpush1.msra.mxu0 %v143
    %172 = vmatprep.subr.mxu0 0.0
    %173 = vmatpush1.msra.mxu0 %v144
    %174 = vmatprep.subr.mxu0 0.0
    %175 = vmatpush1.msra.mxu0 %v145
    %176 = vmatprep.subr.mxu0 0.0
    %177 = vmatpush1.msra.mxu0 %v146
    %178 = vmatprep.subr.mxu0 0.0
    %179 = vmatpush1.msra.mxu0 %v147
    %180 = vmatprep.subr.mxu0 0.0
    %181 = vmatpush1.msra.mxu0 %v148
    %182 = vmatprep.subr.mxu0 0.0
    %183 = vmatpush1.msra.mxu0 %v149
    %184 = vmatprep.subr.mxu0 0.0
    %185 = vmatpush1.msra.mxu0 %v150
    %186 = vmatprep.subr.mxu0 0.0
    %187 = vmatpush1.msra.mxu0 %v151
    %188 = vmatprep.subr.mxu0 0.0
    %189 = vmatpush1.msra.mxu0 %v152
    %190 = vmatprep.subr.mxu0 0.0
    %191 = vmatpush1.msra.mxu0 %v153
    %192 = vmatprep.subr.mxu0 0.0
    %193 = vmatpush1.msra.mxu0 %v154
    %194 = vmatprep.subr.mxu0 0.0
    %195 = vmatpush1.msra.mxu0 0.0
    %196 = vmatprep.subr.mxu0 0.0
    %197 = vmatpush1.msra.mxu0 0.0
    %198 = vmatprep.subr.mxu0 0.0
    %199 = vmatpush1.msra.mxu0 0.0
    %200 = vmatprep.subr.mxu0 0.0
    %201 = vmatpush1.msra.mxu0 0.0
    %202 = vmatprep.subr.mxu0 0.0
    %203 = vmatpush1.msra.mxu0 0.0
    %204 = vmatprep.subr.mxu0 0.0
    %205 = vmatpush1.msra.mxu0 0.0
    %206 = vmatprep.subr.mxu0 0.0
    %207 = vmatpush1.msra.mxu0 0.0
    %208 = vmatprep.subr.mxu0 0.0
    %209 = vmatpush1.msra.mxu0 0.0
    %210 = vmatprep.subr.mxu0 0.0
    %211 = vmatpush1.msra.mxu0 0.0
    %212 = vmatprep.subr.mxu0 0.0
    %213 = vmatpush1.msra.mxu0 0.0
    %214 = vmatprep.subr.mxu0 0.0
    %215 = vmatpush1.msra.mxu0 0.0
    %216 = vmatprep.subr.mxu0 0.0
    %217 = vmatpush1.msra.mxu0 0.0
    %218 = vmatprep.subr.mxu0 0.0
    %219 = vmatpush1.msra.mxu0 0.0
    %220 = vmatprep.subr.mxu0 0.0
    %221 = vmatpush1.msra.mxu0 0.0
    %222 = vmatprep.subr.mxu0 0.0
    %223 = vmatpush1.msra.mxu0 0.0
    %224 = vmatprep.subr.mxu0 0.0
    %225 = vmatpush1.msra.mxu0 0.0
    %226 = vmatprep.mubr.f32.mxu0 0.0
    %227 = vmatmul.mubr.f32.gmra.mrb[0].mxu0 %v138
    %v228 = vpop.f32.mrb[0].mxu0
    %v229 = vadd.f32 %v160, %v228
    %v230 = vpop.f32.mrb[0].mxu0
    %231 = vdwg.mxu0
    %v232 = vmax.f32 %v229, 0.0
    %v233 = vld [vmem:[#allocation7] sm:$0xff]
    %v234 = vld [vmem:[#allocation7 + $0x8] sm:$0xff]
    %v235 = vld [vmem:[#allocation7 + $0x10] sm:$0xff]
    %v236 = vld [vmem:[#allocation7 + $0x18] sm:$0xff]
    %v237 = vld [vmem:[#allocation7 + $0x20] sm:$0xff]
    %v238 = vld [vmem:[#allocation7 + $0x28] sm:$0xff]
    %v239 = vld [vmem:[#allocation7 + $0x30] sm:$0xff]
    %v240 = vld [vmem:[#allocation7 + $0x38] sm:$0xff]
    %v241 = vld [vmem:[#allocation7 + $0x40] sm:$0xff]
    %v242 = vld [vmem:[#allocation7 + $0x48] sm:$0xff]
    %v243 = vld [vmem:[#allocation7 + $0x50] sm:$0xff]
    %v244 = vld [vmem:[#allocation7 + $0x58] sm:$0xff]
    %v245 = vld [vmem:[#allocation7 + $0x60] sm:$0xff]
    %v246 = vld [vmem:[#allocation7 + $0x68] sm:$0xff]
    %v247 = vld [vmem:[#allocation7 + $0x70] sm:$0xff]
    %v248 = vld [vmem:[#allocation7 + $0x78] sm:$0xff]
    %v249 = vld [vmem:[%s4] sm:$0x1]
    %v251 = vlaneseq
    %v252 = vshrl.u32 %v251, 7
    %v253 = vsub.s32 0, %v252
    %v254 = vrot.slane %v249, %v253
    %256 = vmatprep.subr.mxu0 0.0
    %257 = vmatpush1.msra.mxu0 %v233
    %258 = vmatprep.subr.mxu0 0.0
    %259 = vmatpush1.msra.mxu0 %v234
    %260 = vmatprep.subr.mxu0 0.0
    %261 = vmatpush1.msra.mxu0 %v235
    %262 = vmatprep.subr.mxu0 0.0
    %263 = vmatpush1.msra.mxu0 %v236
    %264 = vmatprep.subr.mxu0 0.0
    %265 = vmatpush1.msra.mxu0 %v237
    %266 = vmatprep.subr.mxu0 0.0
    %267 = vmatpush1.msra.mxu0 %v238
    %268 = vmatprep.subr.mxu0 0.0
    %269 = vmatpush1.msra.mxu0 %v239
    %270 = vmatprep.subr.mxu0 0.0
    %271 = vmatpush1.msra.mxu0 %v240
    %272 = vmatprep.subr.mxu0 0.0
    %273 = vmatpush1.msra.mxu0 %v241
    %274 = vmatprep.subr.mxu0 0.0
    %275 = vmatpush1.msra.mxu0 %v242
    %276 = vmatprep.subr.mxu0 0.0
    %277 = vmatpush1.msra.mxu0 %v243
    %278 = vmatprep.subr.mxu0 0.0
    %279 = vmatpush1.msra.mxu0 %v244
    %280 = vmatprep.subr.mxu0 0.0
    %281 = vmatpush1.msra.mxu0 %v245
    %282 = vmatprep.subr.mxu0 0.0
    %283 = vmatpush1.msra.mxu0 %v246
    %284 = vmatprep.subr.mxu0 0.0
    %285 = vmatpush1.msra.mxu0 %v247
    %286 = vmatprep.subr.mxu0 0.0
    %287 = vmatpush1.msra.mxu0 %v248
    %288 = vmatprep.subr.mxu0 0.0
    %289 = vmatpush1.msra.mxu0 0.0
    %290 = vmatprep.subr.mxu0 0.0
    %291 = vmatpush1.msra.mxu0 0.0
    %292 = vmatprep.subr.mxu0 0.0
    %293 = vmatpush1.msra.mxu0 0.0
    %294 = vmatprep.subr.mxu0 0.0
    %295 = vmatpush1.msra.mxu0 0.0
    %296 = vmatprep.subr.mxu0 0.0
    %297 = vmatpush1.msra.mxu0 0.0
    %298 = vmatprep.subr.mxu0 0.0
    %299 = vmatpush1.msra.mxu0 0.0
    %300 = vmatprep.subr.mxu0 0.0
    %301 = vmatpush1.msra.mxu0 0.0
    %302 = vmatprep.subr.mxu0 0.0
    %303 = vmatpush1.msra.mxu0 0.0
    %304 = vmatprep.subr.mxu0 0.0
    %305 = vmatpush1.msra.mxu0 0.0
    %306 = vmatprep.subr.mxu0 0.0
    %307 = vmatpush1.msra.mxu0 0.0
    %308 = vmatprep.subr.mxu0 0.0
    %309 = vmatpush1.msra.mxu0 0.0
    %310 = vmatprep.subr.mxu0 0.0
    %311 = vmatpush1.msra.mxu0 0.0
    %312 = vmatprep.subr.mxu0 0.0
    %313 = vmatpush1.msra.mxu0 0.0
    %314 = vmatprep.subr.mxu0 0.0
    %315 = vmatpush1.msra.mxu0 0.0
    %316 = vmatprep.subr.mxu0 0.0
    %317 = vmatpush1.msra.mxu0 0.0
    %318 = vmatprep.subr.mxu0 0.0
    %319 = vmatpush1.msra.mxu0 0.0
    %320 = vmatprep.mubr.f32.mxu0 0.0
    %321 = vmatmul.mubr.f32.gmra.mrb[0].mxu0 %v232
    %v322 = vpop.f32.mrb[0].mxu0
    %v323 = vadd.f32 %v254, %v322
    %v324 = vpop.f32.mrb[0].mxu0
    %325 = vdwg.mxu0
    %v326 = vmax.f32 %v323, 0.0
    %v327 = vld [vmem:[#allocation8] sm:$0xff]
    %v328 = vld [vmem:[#allocation8 + $0x8] sm:$0xff]
    %v329 = vld [vmem:[#allocation8 + $0x10] sm:$0xff]
    %v330 = vld [vmem:[#allocation8 + $0x18] sm:$0xff]
    %v331 = vld [vmem:[#allocation8 + $0x20] sm:$0xff]
    %v332 = vld [vmem:[#allocation8 + $0x28] sm:$0xff]
    %v333 = vld [vmem:[#allocation8 + $0x30] sm:$0xff]
    %v334 = vld [vmem:[#allocation8 + $0x38] sm:$0xff]
    %v335 = vld [vmem:[#allocation8 + $0x40] sm:$0xff]
    %v336 = vld [vmem:[#allocation8 + $0x48] sm:$0xff]
    %v337 = vld [vmem:[#allocation8 + $0x50] sm:$0xff]
    %v338 = vld [vmem:[#allocation8 + $0x58] sm:$0xff]
    %v339 = vld [vmem:[#allocation8 + $0x60] sm:$0xff]
    %v340 = vld [vmem:[#allocation8 + $0x68] sm:$0xff]
    %v341 = vld [vmem:[#allocation8 + $0x70] sm:$0xff]
    %v342 = vld [vmem:[#allocation8 + $0x78] sm:$0xff]
    %v343 = vld [vmem:[%s6] sm:$0x1]
    %v345 = vlaneseq
    %v346 = vshrl.u32 %v345, 7
    %v347 = vsub.s32 0, %v346
    %v348 = vrot.slane %v343, %v347
    %350 = vmatprep.subr.mxu0 0.0
    %351 = vmatpush1.msra.mxu0 %v327
    %352 = vmatprep.subr.mxu0 0.0
    %353 = vmatpush1.msra.mxu0 %v328
    %354 = vmatprep.subr.mxu0 0.0
    %355 = vmatpush1.msra.mxu0 %v329
    %356 = vmatprep.subr.mxu0 0.0
    %357 = vmatpush1.msra.mxu0 %v330
    %358 = vmatprep.subr.mxu0 0.0
    %359 = vmatpush1.msra.mxu0 %v331
    %360 = vmatprep.subr.mxu0 0.0
    %361 = vmatpush1.msra.mxu0 %v332
    %362 = vmatprep.subr.mxu0 0.0
    %363 = vmatpush1.msra.mxu0 %v333
    %364 = vmatprep.subr.mxu0 0.0
    %365 = vmatpush1.msra.mxu0 %v334
    %366 = vmatprep.subr.mxu0 0.0
    %367 = vmatpush1.msra.mxu0 %v335
    %368 = vmatprep.subr.mxu0 0.0
    %369 = vmatpush1.msra.mxu0 %v336
    %370 = vmatprep.subr.mxu0 0.0
    %371 = vmatpush1.msra.mxu0 %v337
    %372 = vmatprep.subr.mxu0 0.0
    %373 = vmatpush1.msra.mxu0 %v338
    %374 = vmatprep.subr.mxu0 0.0
    %375 = vmatpush1.msra.mxu0 %v339
    %376 = vmatprep.subr.mxu0 0.0
    %377 = vmatpush1.msra.mxu0 %v340
    %378 = vmatprep.subr.mxu0 0.0
    %379 = vmatpush1.msra.mxu0 %v341
    %380 = vmatprep.subr.mxu0 0.0
    %381 = vmatpush1.msra.mxu0 %v342
    %382 = vmatprep.subr.mxu0 0.0
    %383 = vmatpush1.msra.mxu0 0.0
    %384 = vmatprep.subr.mxu0 0.0
    %385 = vmatpush1.msra.mxu0 0.0
    %386 = vmatprep.subr.mxu0 0.0
    %387 = vmatpush1.msra.mxu0 0.0
    %388 = vmatprep.subr.mxu0 0.0
    %389 = vmatpush1.msra.mxu0 0.0
    %390 = vmatprep.subr.mxu0 0.0
    %391 = vmatpush1.msra.mxu0 0.0
    %392 = vmatprep.subr.mxu0 0.0
    %393 = vmatpush1.msra.mxu0 0.0
    %394 = vmatprep.subr.mxu0 0.0
    %395 = vmatpush1.msra.mxu0 0.0
    %396 = vmatprep.subr.mxu0 0.0
    %397 = vmatpush1.msra.mxu0 0.0
    %398 = vmatprep.subr.mxu0 0.0
    %399 = vmatpush1.msra.mxu0 0.0
    %400 = vmatprep.subr.mxu0 0.0
    %401 = vmatpush1.msra.mxu0 0.0
    %402 = vmatprep.subr.mxu0 0.0
    %403 = vmatpush1.msra.mxu0 0.0
    %404 = vmatprep.subr.mxu0 0.0
    %405 = vmatpush1.msra.mxu0 0.0
    %406 = vmatprep.subr.mxu0 0.0
    %407 = vmatpush1.msra.mxu0 0.0
    %408 = vmatprep.subr.mxu0 0.0
    %409 = vmatpush1.msra.mxu0 0.0
    %410 = vmatprep.subr.mxu0 0.0
    %411 = vmatpush1.msra.mxu0 0.0
    %412 = vmatprep.subr.mxu0 0.0
    %413 = vmatpush1.msra.mxu0 0.0
    %414 = vmatprep.mubr.f32.mxu0 0.0
    %415 = vmatmul.mubr.f32.gmra.mrb[0].mxu0 %v326
    %v416 = vpop.f32.mrb[0].mxu0
    %v417 = vadd.f32 %v348, %v416
    %v418 = vpop.f32.mrb[0].mxu0
    %419 = vdwg.mxu0
    %v420 = vmax.f32 %v417, 0.0
    %v421 = vld [vmem:[#allocation10] sm:$0xff]
    %v422 = vld [vmem:[#allocation10 + $0x8] sm:$0xff]
    %v423 = vld [vmem:[#allocation10 + $0x10] sm:$0xff]
    %v424 = vld [vmem:[#allocation10 + $0x18] sm:$0xff]
    %v425 = vld [vmem:[#allocation10 + $0x20] sm:$0xff]
    %v426 = vld [vmem:[#allocation10 + $0x28] sm:$0xff]
    %v427 = vld [vmem:[#allocation10 + $0x30] sm:$0xff]
    %v428 = vld [vmem:[#allocation10 + $0x38] sm:$0xff]
    %v429 = vld [vmem:[#allocation10 + $0x40] sm:$0xff]
    %v430 = vld [vmem:[#allocation10 + $0x48] sm:$0xff]
    %v431 = vld [vmem:[#allocation10 + $0x50] sm:$0xff]
    %v432 = vld [vmem:[#allocation10 + $0x58] sm:$0xff]
    %v433 = vld [vmem:[#allocation10 + $0x60] sm:$0xff]
    %v434 = vld [vmem:[#allocation10 + $0x68] sm:$0xff]
    %v435 = vld [vmem:[#allocation10 + $0x70] sm:$0xff]
    %v436 = vld [vmem:[#allocation10 + $0x78] sm:$0xff]
    %v437 = vld [vmem:[%s8] sm:$0x1]
    %v439 = vlaneseq
    %v440 = vshrl.u32 %v439, 7
    %v441 = vsub.s32 0, %v440
    %v442 = vrot.slane %v437, %v441
    %444 = vmatprep.subr.mxu0 0.0
    %445 = vmatpush1.msra.mxu0 %v421
    %446 = vmatprep.subr.mxu0 0.0
    %447 = vmatpush1.msra.mxu0 %v422
    %448 = vmatprep.subr.mxu0 0.0
    %449 = vmatpush1.msra.mxu0 %v423
    %450 = vmatprep.subr.mxu0 0.0
    %451 = vmatpush1.msra.mxu0 %v424
    %452 = vmatprep.subr.mxu0 0.0
    %453 = vmatpush1.msra.mxu0 %v425
    %454 = vmatprep.subr.mxu0 0.0
    %455 = vmatpush1.msra.mxu0 %v426
    %456 = vmatprep.subr.mxu0 0.0
    %457 = vmatpush1.msra.mxu0 %v427
    %458 = vmatprep.subr.mxu0 0.0
    %459 = vmatpush1.msra.mxu0 %v428
    %460 = vmatprep.subr.mxu0 0.0
    %461 = vmatpush1.msra.mxu0 %v429
    %462 = vmatprep.subr.mxu0 0.0
    %463 = vmatpush1.msra.mxu0 %v430
    %464 = vmatprep.subr.mxu0 0.0
    %465 = vmatpush1.msra.mxu0 %v431
    %466 = vmatprep.subr.mxu0 0.0
    %467 = vmatpush1.msra.mxu0 %v432
    %468 = vmatprep.subr.mxu0 0.0
    %469 = vmatpush1.msra.mxu0 %v433
    %470 = vmatprep.subr.mxu0 0.0
    %471 = vmatpush1.msra.mxu0 %v434
    %472 = vmatprep.subr.mxu0 0.0
    %473 = vmatpush1.msra.mxu0 %v435
    %474 = vmatprep.subr.mxu0 0.0
    %475 = vmatpush1.msra.mxu0 %v436
    %476 = vmatprep.subr.mxu0 0.0
    %477 = vmatpush1.msra.mxu0 0.0
    %478 = vmatprep.subr.mxu0 0.0
    %479 = vmatpush1.msra.mxu0 0.0
    %480 = vmatprep.subr.mxu0 0.0
    %481 = vmatpush1.msra.mxu0 0.0
    %482 = vmatprep.subr.mxu0 0.0
    %483 = vmatpush1.msra.mxu0 0.0
    %484 = vmatprep.subr.mxu0 0.0
    %485 = vmatpush1.msra.mxu0 0.0
    %486 = vmatprep.subr.mxu0 0.0
    %487 = vmatpush1.msra.mxu0 0.0
    %488 = vmatprep.subr.mxu0 0.0
    %489 = vmatpush1.msra.mxu0 0.0
    %490 = vmatprep.subr.mxu0 0.0
    %491 = vmatpush1.msra.mxu0 0.0
    %492 = vmatprep.subr.mxu0 0.0
    %493 = vmatpush1.msra.mxu0 0.0
    %494 = vmatprep.subr.mxu0 0.0
    %495 = vmatpush1.msra.mxu0 0.0
    %496 = vmatprep.subr.mxu0 0.0
    %497 = vmatpush1.msra.mxu0 0.0
    %498 = vmatprep.subr.mxu0 0.0
    %499 = vmatpush1.msra.mxu0 0.0
    %500 = vmatprep.subr.mxu0 0.0
    %501 = vmatpush1.msra.mxu0 0.0
    %502 = vmatprep.subr.mxu0 0.0
    %503 = vmatpush1.msra.mxu0 0.0
    %504 = vmatprep.subr.mxu0 0.0
    %505 = vmatpush1.msra.mxu0 0.0
    %506 = vmatprep.subr.mxu0 0.0
    %507 = vmatpush1.msra.mxu0 0.0
    %508 = vmatprep.mubr.f32.mxu0 0.0
    %509 = vmatmul.mubr.f32.gmra.mrb[0].mxu0 %v420
    %v510 = vpop.f32.mrb[0].mxu0
    %v511 = vadd.f32 %v442, %v510
    %v512 = vpop.f32.mrb[0].mxu0
    %513 = vdwg.mxu0
    %v514 = vmax.f32 %v511, 0.0
    %v515 = vld [vmem:[#allocation11] sm:$0xff]
    %v516 = vld [vmem:[#allocation11 + $0x8] sm:$0xff]
    %v517 = vld [vmem:[#allocation11 + $0x10] sm:$0xff]
    %v518 = vld [vmem:[#allocation11 + $0x18] sm:$0xff]
    %v519 = vld [vmem:[#allocation11 + $0x20] sm:$0xff]
    %v520 = vld [vmem:[#allocation11 + $0x28] sm:$0xff]
    %v521 = vld [vmem:[#allocation11 + $0x30] sm:$0xff]
    %v522 = vld [vmem:[#allocation11 + $0x38] sm:$0xff]
    %v523 = vld [vmem:[#allocation11 + $0x40] sm:$0xff]
    %v524 = vld [vmem:[#allocation11 + $0x48] sm:$0xff]
    %v525 = vld [vmem:[#allocation11 + $0x50] sm:$0xff]
    %v526 = vld [vmem:[#allocation11 + $0x58] sm:$0xff]
    %v527 = vld [vmem:[#allocation11 + $0x60] sm:$0xff]
    %v528 = vld [vmem:[#allocation11 + $0x68] sm:$0xff]
    %v529 = vld [vmem:[#allocation11 + $0x70] sm:$0xff]
    %v530 = vld [vmem:[#allocation11 + $0x78] sm:$0xff]
    %v531 = vld [vmem:[%s10] sm:$0x1]
    %v533 = vlaneseq
    %v534 = vshrl.u32 %v533, 7
    %v535 = vsub.s32 0, %v534
    %v536 = vrot.slane %v531, %v535
    %538 = vmatprep.subr.mxu0 0.0
    %539 = vmatpush1.msra.mxu0 %v515
    %540 = vmatprep.subr.mxu0 0.0
    %541 = vmatpush1.msra.mxu0 %v516
    %542 = vmatprep.subr.mxu0 0.0
    %543 = vmatpush1.msra.mxu0 %v517
    %544 = vmatprep.subr.mxu0 0.0
    %545 = vmatpush1.msra.mxu0 %v518
    %546 = vmatprep.subr.mxu0 0.0
    %547 = vmatpush1.msra.mxu0 %v519
    %548 = vmatprep.subr.mxu0 0.0
    %549 = vmatpush1.msra.mxu0 %v520
    %550 = vmatprep.subr.mxu0 0.0
    %551 = vmatpush1.msra.mxu0 %v521
    %552 = vmatprep.subr.mxu0 0.0
    %553 = vmatpush1.msra.mxu0 %v522
    %554 = vmatprep.subr.mxu0 0.0
    %555 = vmatpush1.msra.mxu0 %v523
    %556 = vmatprep.subr.mxu0 0.0
    %557 = vmatpush1.msra.mxu0 %v524
    %558 = vmatprep.subr.mxu0 0.0
    %559 = vmatpush1.msra.mxu0 %v525
    %560 = vmatprep.subr.mxu0 0.0
    %561 = vmatpush1.msra.mxu0 %v526
    %562 = vmatprep.subr.mxu0 0.0
    %563 = vmatpush1.msra.mxu0 %v527
    %564 = vmatprep.subr.mxu0 0.0
    %565 = vmatpush1.msra.mxu0 %v528
    %566 = vmatprep.subr.mxu0 0.0
    %567 = vmatpush1.msra.mxu0 %v529
    %568 = vmatprep.subr.mxu0 0.0
    %569 = vmatpush1.msra.mxu0 %v530
    %570 = vmatprep.subr.mxu0 0.0
    %571 = vmatpush1.msra.mxu0 0.0
    %572 = vmatprep.subr.mxu0 0.0
    %573 = vmatpush1.msra.mxu0 0.0
    %574 = vmatprep.subr.mxu0 0.0
    %575 = vmatpush1.msra.mxu0 0.0
    %576 = vmatprep.subr.mxu0 0.0
    %577 = vmatpush1.msra.mxu0 0.0
    %578 = vmatprep.subr.mxu0 0.0
    %579 = vmatpush1.msra.mxu0 0.0
    %580 = vmatprep.subr.mxu0 0.0
    %581 = vmatpush1.msra.mxu0 0.0
    %582 = vmatprep.subr.mxu0 0.0
    %583 = vmatpush1.msra.mxu0 0.0
    %584 = vmatprep.subr.mxu0 0.0
    %585 = vmatpush1.msra.mxu0 0.0
    %586 = vmatprep.subr.mxu0 0.0
    %587 = vmatpush1.msra.mxu0 0.0
    %588 = vmatprep.subr.mxu0 0.0
    %589 = vmatpush1.msra.mxu0 0.0
    %590 = vmatprep.subr.mxu0 0.0
    %591 = vmatpush1.msra.mxu0 0.0
    %592 = vmatprep.subr.mxu0 0.0
    %593 = vmatpush1.msra.mxu0 0.0
    %594 = vmatprep.subr.mxu0 0.0
    %595 = vmatpush1.msra.mxu0 0.0
    %596 = vmatprep.subr.mxu0 0.0
    %597 = vmatpush1.msra.mxu0 0.0
    %598 = vmatprep.subr.mxu0 0.0
    %599 = vmatpush1.msra.mxu0 0.0
    %600 = vmatprep.subr.mxu0 0.0
    %601 = vmatpush1.msra.mxu0 0.0
    %602 = vmatprep.mubr.f32.mxu0 0.0
    %603 = vmatmul.mubr.f32.gmra.mrb[0].mxu0 %v514
    %v604 = vpop.f32.mrb[0].mxu0
    %v605 = vadd.f32 %v536, %v604
    %v606 = vpop.f32.mrb[0].mxu0
    %607 = vdwg.mxu0
    %v608 = vmax.f32 %v605, 0.0
    %v609 = vld [vmem:[#allocation13] sm:$0xff]
    %v610 = vld [vmem:[#allocation13 + $0x8] sm:$0xff]
    %v611 = vld [vmem:[#allocation13 + $0x10] sm:$0xff]
    %v612 = vld [vmem:[#allocation13 + $0x18] sm:$0xff]
    %v613 = vld [vmem:[#allocation13 + $0x20] sm:$0xff]
    %v614 = vld [vmem:[#allocation13 + $0x28] sm:$0xff]
    %v615 = vld [vmem:[#allocation13 + $0x30] sm:$0xff]
    %v616 = vld [vmem:[#allocation13 + $0x38] sm:$0xff]
    %v617 = vld [vmem:[#allocation13 + $0x40] sm:$0xff]
    %v618 = vld [vmem:[#allocation13 + $0x48] sm:$0xff]
    %v619 = vld [vmem:[#allocation13 + $0x50] sm:$0xff]
    %v620 = vld [vmem:[#allocation13 + $0x58] sm:$0xff]
    %v621 = vld [vmem:[#allocation13 + $0x60] sm:$0xff]
    %v622 = vld [vmem:[#allocation13 + $0x68] sm:$0xff]
    %v623 = vld [vmem:[#allocation13 + $0x70] sm:$0xff]
    %v624 = vld [vmem:[#allocation13 + $0x78] sm:$0xff]
    %v625 = vld [vmem:[%s12] sm:$0x1]
    %v627 = vlaneseq
    %v628 = vshrl.u32 %v627, 7
    %v629 = vsub.s32 0, %v628
    %v630 = vrot.slane %v625, %v629
    %632 = vmatprep.subr.mxu0 0.0
    %633 = vmatpush1.msra.mxu0 %v609
    %634 = vmatprep.subr.mxu0 0.0
    %635 = vmatpush1.msra.mxu0 %v610
    %636 = vmatprep.subr.mxu0 0.0
    %637 = vmatpush1.msra.mxu0 %v611
    %638 = vmatprep.subr.mxu0 0.0
    %639 = vmatpush1.msra.mxu0 %v612
    %640 = vmatprep.subr.mxu0 0.0
    %641 = vmatpush1.msra.mxu0 %v613
    %642 = vmatprep.subr.mxu0 0.0
    %643 = vmatpush1.msra.mxu0 %v614
    %644 = vmatprep.subr.mxu0 0.0
    %645 = vmatpush1.msra.mxu0 %v615
    %646 = vmatprep.subr.mxu0 0.0
    %647 = vmatpush1.msra.mxu0 %v616
    %648 = vmatprep.subr.mxu0 0.0
    %649 = vmatpush1.msra.mxu0 %v617
    %650 = vmatprep.subr.mxu0 0.0
    %651 = vmatpush1.msra.mxu0 %v618
    %652 = vmatprep.subr.mxu0 0.0
    %653 = vmatpush1.msra.mxu0 %v619
    %654 = vmatprep.subr.mxu0 0.0
    %655 = vmatpush1.msra.mxu0 %v620
    %656 = vmatprep.subr.mxu0 0.0
    %657 = vmatpush1.msra.mxu0 %v621
    %658 = vmatprep.subr.mxu0 0.0
    %659 = vmatpush1.msra.mxu0 %v622
    %660 = vmatprep.subr.mxu0 0.0
    %661 = vmatpush1.msra.mxu0 %v623
    %662 = vmatprep.subr.mxu0 0.0
    %663 = vmatpush1.msra.mxu0 %v624
    %664 = vmatprep.subr.mxu0 0.0
    %665 = vmatpush1.msra.mxu0 0.0
    %666 = vmatprep.subr.mxu0 0.0
    %667 = vmatpush1.msra.mxu0 0.0
    %668 = vmatprep.subr.mxu0 0.0
    %669 = vmatpush1.msra.mxu0 0.0
    %670 = vmatprep.subr.mxu0 0.0
    %671 = vmatpush1.msra.mxu0 0.0
    %672 = vmatprep.subr.mxu0 0.0
    %673 = vmatpush1.msra.mxu0 0.0
    %674 = vmatprep.subr.mxu0 0.0
    %675 = vmatpush1.msra.mxu0 0.0
    %676 = vmatprep.subr.mxu0 0.0
    %677 = vmatpush1.msra.mxu0 0.0
    %678 = vmatprep.subr.mxu0 0.0
    %679 = vmatpush1.msra.mxu0 0.0
    %680 = vmatprep.subr.mxu0 0.0
    %681 = vmatpush1.msra.mxu0 0.0
    %682 = vmatprep.subr.mxu0 0.0
    %683 = vmatpush1.msra.mxu0 0.0
    %684 = vmatprep.subr.mxu0 0.0
    %685 = vmatpush1.msra.mxu0 0.0
    %686 = vmatprep.subr.mxu0 0.0
    %687 = vmatpush1.msra.mxu0 0.0
    %688 = vmatprep.subr.mxu0 0.0
    %689 = vmatpush1.msra.mxu0 0.0
    %690 = vmatprep.subr.mxu0 0.0
    %691 = vmatpush1.msra.mxu0 0.0
    %692 = vmatprep.subr.mxu0 0.0
    %693 = vmatpush1.msra.mxu0 0.0
    %694 = vmatprep.subr.mxu0 0.0
    %695 = vmatpush1.msra.mxu0 0.0
    %696 = vmatprep.mubr.f32.mxu0 0.0
    %697 = vmatmul.mubr.f32.gmra.mrb[0].mxu0 %v608
    %v698 = vpop.f32.mrb[0].mxu0
    %v699 = vadd.f32 %v630, %v698
    %v700 = vpop.f32.mrb[0].mxu0
    %701 = vdwg.mxu0
    %702 = vst [vmem:[#allocation14] sm:$0xff] %v699
    // Predicated region
    $region82: #{tpu_custom_call.1} parent=1 // pred_check
      _
    $region83: #{tpu_custom_call.1} parent=1 // pred_check_branch
      %704 = sbr.rel (0) target = $region85
    $region84: #{tpu_custom_call.1} parent=1 // pred_region
      %s706 = ssub.s32 128, 128
      %707 = vsyncadd [#allocation4], %s706
      %s709 = sshll.u32 [#allocation14], 4
      %s710 = int_to_ptr.vmem [resolvable:$true] %s709
      %712 = dma.vmem_to_hbm [thread:$0]  %s710, 128, %s13, [#allocation4]
    $region85: #{tpu_custom_call.1} parent=1 // pred_fallthru
      _
    // Predicated region
    $region86: #{tpu_custom_call.1} parent=1 // pred_check
      _
    $region87: #{tpu_custom_call.1} parent=1 // pred_check_branch
      %714 = sbr.rel (0) target = $region89
    $region88: #{tpu_custom_call.1} parent=1 // pred_region
      %715 = dma.done [#allocation4], 128
    $region89: #{tpu_custom_call.1} parent=1 // pred_fallthru
      _
    %716 = vsyncpa [#allocation3], 1
    %717 = vsyncpa [#allocation6], 1
    %718 = vsyncpa [#allocation9], 1
    %719 = vsyncpa [#allocation12], 1
    %720 = vsyncpa [#allocation4], 1

</llo_original>
